<compile_context>
chip_gen: v7x
topology: tpu7x:2x2x1
jax: 0.10.0
libtpu: 0.0.40
codegen_flags: <defaults>
</compile_context>

<pallas_src>
import functools

import jax
import jax.numpy as jnp
from jax.experimental import pallas as pl
from jax.experimental.pallas import tpu as pltpu


def _combined_trinet_kernel(
    x1_ref, x2_ref, x3_ref, x4_ref,
    wb1_ref, bb1_ref, wb2_ref, bb2_ref, wb3_ref, bb3_ref, wb4_ref, bb4_ref,
    wf1_ref, wf2_ref, wf3_ref, wf4_ref, bf_ref,
    out_ref,
):
    """Fused 4-branch Linear -> (cat + fc1) -> ReLU -> L2-normalize.

    x{i}_ref : (tile_n, d_i) bf16 flattened branch slice
    wb{i}    : (d_i, emb) bf16 ; bb{i}: (1, emb) f32
    wf{i}    : (emb, feat_pad) bf16 (row-slice i of the fc1 weight); bf: (1, feat_pad) f32
    out_ref  : (tile_n, feat_pad) f32, L2-normalized along dim=1
    """
    f32 = jnp.float32
    cdt = wf1_ref.dtype  # bf16 compute dtype for MXU operands

    # Branch stand-ins: Linear(d_i -> emb). bf16 operands, f32 accumulation + bias.
    h1 = jnp.dot(x1_ref[...], wb1_ref[...], preferred_element_type=f32) + bb1_ref[...]
    h2 = jnp.dot(x2_ref[...], wb2_ref[...], preferred_element_type=f32) + bb2_ref[...]
    h3 = jnp.dot(x3_ref[...], wb3_ref[...], preferred_element_type=f32) + bb3_ref[...]
    h4 = jnp.dot(x4_ref[...], wb4_ref[...], preferred_element_type=f32) + bb4_ref[...]

    # fc1 on cat([h1..h4], dim=1)  ==  sum_i h_i @ W_fc1[i*emb:(i+1)*emb, :]
    z = (jnp.dot(h1.astype(cdt), wf1_ref[...], preferred_element_type=f32)
         + jnp.dot(h2.astype(cdt), wf2_ref[...], preferred_element_type=f32)
         + jnp.dot(h3.astype(cdt), wf3_ref[...], preferred_element_type=f32)
         + jnp.dot(h4.astype(cdt), wf4_ref[...], preferred_element_type=f32)
         + bf_ref[...])
    z = jnp.maximum(z, 0.0)  # ReLU (f32, VPU)

    # F.normalize(z, p=2, dim=1): z / max(||z||, 1e-12) == z * rsqrt(max(||z||^2, 1e-24))
    # (sqrt is monotone). Padded lanes of z are exactly zero -> norm unchanged.
    sq = jnp.sum(z * z, axis=1, keepdims=True)          # XLU lane reduce
    inv = jax.lax.rsqrt(jnp.maximum(sq, 1e-24))         # EUP
    out_ref[...] = (z * inv).astype(out_ref.dtype)


def _round_up(x: int, m: int) -> int:
    return ((x + m - 1) // m) * m


def _pick_tile_n(n: int, per_row_bytes: int, resident_bytes: int) -> int:
    """Largest divisor of n (<=512) whose double-buffered working set fits VMEM budget."""
    budget = 24 << 20  # headroom under the default scoped-VMEM limit on all chips
    largest_divisor = None
    for t in (512, 256, 128, 64, 32, 16, 8):
        if n % t != 0:
            continue
        if largest_divisor is None:
            largest_divisor = t
        if t * per_row_bytes + resident_bytes <= budget:
            return t
    if largest_divisor is not None:
        return largest_divisor
    return n  # full-dim block (always legal)


@functools.partial(jax.jit, static_argnums=(1,), static_argnames=("tile_n",))
def combined_trinet_forward(x, act_dim, params, *, tile_n=None):
    """CombinedTriNet forward.

    x       : (N, C, H, W) float32, NCHW (same layout as the PyTorch module).
    act_dim : python int; W-axis slice boundaries are
              [0:act_dim], [act_dim:act_dim+1], [act_dim+1:act_dim+11], [act_dim+11:].
    params  : dict with wb1..wb4 (d_i, emb), bb1..bb4 (1, emb),
              w_fc1 (4*emb, feature_dim), b_fc1 (1, feature_dim).
    """
    n, c, h, w = x.shape
    assert w > act_dim + 11, "need a non-empty prob slice"

    bf16, f32 = jnp.bfloat16, jnp.float32

    # --- wrapper glue: bf16 cast once, then slice along W + flatten (jit-fused XLA) ---
    x_b = x.astype(bf16)
    bounds = [(0, act_dim), (act_dim, act_dim + 1),
              (act_dim + 1, act_dim + 11), (act_dim + 11, w)]
    xs = [x_b[:, :, :, lo:hi].reshape(n, -1) for lo, hi in bounds]
    d1, d2, d3, d4 = (a.shape[1] for a in xs)
    d_ins = (d1, d2, d3, d4)
    d_total = d1 + d2 + d3 + d4

    wb = [params[f"wb{i}"].astype(bf16) for i in range(1, 5)]
    bb = [params[f"bb{i}"].astype(f32) for i in range(1, 5)]
    emb = wb[0].shape[1]
    for i, d in enumerate(d_ins):
        assert wb[i].shape == (d, emb)
        assert bb[i].shape == (1, emb)

    # fc1: lane-pad the output feature dim to a multiple of 128 (zero padding leaves the
    # L2 norm unchanged); split its rows per branch so the kernel needs no concatenation.
    w_fc1 = params["w_fc1"]
    b_fc1 = params["b_fc1"].reshape(1, -1)
    feat = w_fc1.shape[1]
    assert w_fc1.shape[0] == 4 * emb
    feat_pad = max(_round_up(feat, 128), 128)
    if feat_pad != feat:
        w_fc1 = jnp.pad(w_fc1, ((0, 0), (0, feat_pad - feat)))
        b_fc1 = jnp.pad(b_fc1, ((0, 0), (0, feat_pad - feat)))
    wf_full = w_fc1.astype(bf16)
    wf_split = [wf_full[k * emb:(k + 1) * emb, :] for k in range(4)]
    bfp = b_fc1.astype(f32)

    # --- batch grid (parallel), tile sized to VMEM ---
    resident_bytes = 2 * (d_total * emb * 2 + 4 * emb * 4
                          + 4 * emb * feat_pad * 2 + feat_pad * 4)
    per_row_bytes = 2 * (d_total * 2 + feat_pad * 4)  # double-buffered bf16 in + f32 out
    if tile_n is None or n % tile_n != 0:
        tile_n = _pick_tile_n(n, per_row_bytes, resident_bytes)
    grid = (n // tile_n,)

    vmem = pltpu.MemorySpace.VMEM

    def row_spec(d):           # batch-tiled activations / output
        return pl.BlockSpec((tile_n, d), lambda i: (i, 0), memory_space=vmem)

    def resident_spec(shape):  # weights / biases: constant block -> stay VMEM-resident
        return pl.BlockSpec(shape, lambda i: (0, 0), memory_space=vmem)

    in_specs = [
        row_spec(d1), row_spec(d2), row_spec(d3), row_spec(d4),
        resident_spec((d1, emb)), resident_spec((1, emb)),
        resident_spec((d2, emb)), resident_spec((1, emb)),
        resident_spec((d3, emb)), resident_spec((1, emb)),
        resident_spec((d4, emb)), resident_spec((1, emb)),
        resident_spec((emb, feat_pad)), resident_spec((emb, feat_pad)),
        resident_spec((emb, feat_pad)), resident_spec((emb, feat_pad)),
        resident_spec((1, feat_pad)),
    ]
    out_specs = row_spec(feat_pad)

    flops = 2 * n * (d_total * emb + 4 * emb * feat_pad)
    bytes_accessed = (
        n * d_total * 2                                # bf16 activations
        + (d_total * emb + 4 * emb * feat_pad) * 2     # bf16 weights
        + (4 * emb + feat_pad) * 4                     # f32 biases
        + n * feat_pad * 4                             # f32 output
    )
    cost = pl.CostEstimate(flops=flops, transcendentals=n,
                           bytes_accessed=bytes_accessed)

    out = pl.pallas_call(
        _combined_trinet_kernel,
        out_shape=jax.ShapeDtypeStruct((n, feat_pad), f32),
        grid=grid,
        in_specs=in_specs,
        out_specs=out_specs,
        compiler_params=pltpu.CompilerParams(dimension_semantics=("parallel",)),
        cost_estimate=cost,
    )(
        xs[0], xs[1], xs[2], xs[3],
        wb[0], bb[0], wb[1], bb[1], wb[2], bb[2], wb[3], bb[3],
        wf_split[0], wf_split[1], wf_split[2], wf_split[3],
        bfp,
    )

    return out[:, :feat]


def _reference(x, act_dim, params):
    """Pure-JAX reference mirroring the kernel's bf16 operand / f32 accumulation math."""
    n, _, _, w = x.shape
    bf16, f32 = jnp.bfloat16, jnp.float32
    bounds = [(0, act_dim), (act_dim, act_dim + 1),
              (act_dim + 1, act_dim + 11), (act_dim + 11, w)]
    hs = []
    for i, (lo, hi) in enumerate(bounds, start=1):
        xi = x[:, :, :, lo:hi].reshape(n, -1).astype(bf16).astype(f32)
        wi = params[f"wb{i}"].astype(bf16).astype(f32)
        hs.append(xi @ wi + params[f"bb{i}"])
    hcat = jnp.concatenate(hs, axis=1)
    wf = params["w_fc1"].astype(bf16).astype(f32)
    z = hcat.astype(bf16).astype(f32) @ wf + params["b_fc1"].reshape(1, -1)
    z = jnp.maximum(z, 0.0)
    norm = jnp.maximum(jnp.sqrt(jnp.sum(z * z, axis=1, keepdims=True)), 1e-12)
    return z / norm


if __name__ == "__main__":
    # Small, module-consistent shapes.
    N, C, H, W = 16, 4, 16, 32
    ACT_DIM = 5                       # W slices: 5 | 1 | 10 | 16
    EMB_DIM = 64
    FEATURE_DIM = 64                  # nn.Module default feature_dim

    widths = [ACT_DIM, 1, 10, W - (ACT_DIM + 11)]
    d_ins = [C * H * wd for wd in widths]

    key = jax.random.PRNGKey(0)
    keys = jax.random.split(key, 11)

    x = jax.random.normal(keys[0], (N, C, H, W), dtype=jnp.float32)

    params = {}
    for i, d in enumerate(d_ins, start=1):
        params[f"wb{i}"] = jax.random.normal(
            keys[2 * i - 1], (d, EMB_DIM), dtype=jnp.float32) * (1.0 / (d ** 0.5))
        params[f"bb{i}"] = jax.random.normal(
            keys[2 * i], (1, EMB_DIM), dtype=jnp.float32) * 0.01
    params["w_fc1"] = jax.random.normal(
        keys[9], (4 * EMB_DIM, FEATURE_DIM), dtype=jnp.float32) * (1.0 / ((4 * EMB_DIM) ** 0.5))
    params["b_fc1"] = jax.random.normal(
        keys[10], (1, FEATURE_DIM), dtype=jnp.float32) * 0.01

    # tile_n=8 -> grid=(2,): exercises the batch-parallel grid at small N.
    out_emb = combined_trinet_forward(x, ACT_DIM, params, tile_n=8)
    out_emb = jax.block_until_ready(out_emb)

    # Also exercise the automatic tile picker once.
    out_auto = jax.block_until_ready(combined_trinet_forward(x, ACT_DIM, params))

    ref = _reference(x, ACT_DIM, params)
    assert out_emb.shape == (N, FEATURE_DIM)
    assert bool(jnp.all(jnp.isfinite(out_emb)))
    assert bool(jnp.allclose(out_emb, ref, atol=2e-3, rtol=2e-2)), \
        float(jnp.max(jnp.abs(out_emb - ref)))
    assert bool(jnp.allclose(out_auto, ref, atol=2e-3, rtol=2e-2)), \
        float(jnp.max(jnp.abs(out_auto - ref)))

    print("KERNEL_OK")
</pallas_src>

<mosaic_0001>
module attributes {stable_mosaic.version = 11 : i64} {
  func.func @_combined_trinet_kernel(%arg0: i32, %arg1: memref<8x320xbf16, #tpu.memory_space<vmem>>, %arg2: memref<8x64xbf16, #tpu.memory_space<vmem>>, %arg3: memref<8x640xbf16, #tpu.memory_space<vmem>>, %arg4: memref<8x1024xbf16, #tpu.memory_space<vmem>>, %arg5: memref<320x64xbf16, #tpu.memory_space<vmem>>, %arg6: memref<1x64xf32, #tpu.memory_space<vmem>>, %arg7: memref<64x64xbf16, #tpu.memory_space<vmem>>, %arg8: memref<1x64xf32, #tpu.memory_space<vmem>>, %arg9: memref<640x64xbf16, #tpu.memory_space<vmem>>, %arg10: memref<1x64xf32, #tpu.memory_space<vmem>>, %arg11: memref<1024x64xbf16, #tpu.memory_space<vmem>>, %arg12: memref<1x64xf32, #tpu.memory_space<vmem>>, %arg13: memref<64x128xbf16, #tpu.memory_space<vmem>>, %arg14: memref<64x128xbf16, #tpu.memory_space<vmem>>, %arg15: memref<64x128xbf16, #tpu.memory_space<vmem>>, %arg16: memref<64x128xbf16, #tpu.memory_space<vmem>>, %arg17: memref<1x128xf32, #tpu.memory_space<vmem>>, %arg18: memref<8x128xf32, #tpu.memory_space<vmem>>) attributes {dimension_semantics = [#tpu.dimension_semantics<parallel>], iteration_bounds = array<i64: 2>, scalar_prefetch = 0 : i64, scratch_operands = 0 : i64, tpu.core_type = #tpu.core_type<tc>, window_params = [{transform_indices = @transform_0, window_bounds = array<i64: 8, 320>}, {transform_indices = @transform_1, window_bounds = array<i64: 8, 64>}, {transform_indices = @transform_2, window_bounds = array<i64: 8, 640>}, {transform_indices = @transform_3, window_bounds = array<i64: 8, 1024>}, {pipeline_mode = #tpu.pipeline_mode<synchronous>, transform_indices = @transform_4, window_bounds = array<i64: 320, 64>}, {pipeline_mode = #tpu.pipeline_mode<synchronous>, transform_indices = @transform_5, window_bounds = array<i64: 1, 64>}, {pipeline_mode = #tpu.pipeline_mode<synchronous>, transform_indices = @transform_6, window_bounds = array<i64: 64, 64>}, {pipeline_mode = #tpu.pipeline_mode<synchronous>, transform_indices = @transform_7, window_bounds = array<i64: 1, 64>}, {pipeline_mode = #tpu.pipeline_mode<synchronous>, transform_indices = @transform_8, window_bounds = array<i64: 640, 64>}, {pipeline_mode = #tpu.pipeline_mode<synchronous>, transform_indices = @transform_9, window_bounds = array<i64: 1, 64>}, {pipeline_mode = #tpu.pipeline_mode<synchronous>, transform_indices = @transform_10, window_bounds = array<i64: 1024, 64>}, {pipeline_mode = #tpu.pipeline_mode<synchronous>, transform_indices = @transform_11, window_bounds = array<i64: 1, 64>}, {pipeline_mode = #tpu.pipeline_mode<synchronous>, transform_indices = @transform_12, window_bounds = array<i64: 64, 128>}, {pipeline_mode = #tpu.pipeline_mode<synchronous>, transform_indices = @transform_13, window_bounds = array<i64: 64, 128>}, {pipeline_mode = #tpu.pipeline_mode<synchronous>, transform_indices = @transform_14, window_bounds = array<i64: 64, 128>}, {pipeline_mode = #tpu.pipeline_mode<synchronous>, transform_indices = @transform_15, window_bounds = array<i64: 64, 128>}, {pipeline_mode = #tpu.pipeline_mode<synchronous>, transform_indices = @transform_16, window_bounds = array<i64: 1, 128>}, {transform_indices = @transform_17, window_bounds = array<i64: 8, 128>}]} {
    %c0 = arith.constant 0 : index
    %c0_0 = arith.constant 0 : index
    %0 = vector.load %arg1[%c0, %c0_0] : memref<8x320xbf16, #tpu.memory_space<vmem>>, vector<8x320xbf16>
    %c0_1 = arith.constant 0 : index
    %c0_2 = arith.constant 0 : index
    %1 = vector.load %arg5[%c0_1, %c0_2] : memref<320x64xbf16, #tpu.memory_space<vmem>>, vector<320x64xbf16>
    %cst = arith.constant dense<0.000000e+00> : vector<8x64xf32>
    %2 = tpu.matmul %0, %1, %cst {dimension_numbers = #tpu.dot_dimension_numbers<[1], [0], [0], [1], [0, 0, 1, 1], [], []>} : vector<8x320xbf16>, vector<320x64xbf16>, vector<8x64xf32> -> vector<8x64xf32>
    %c0_3 = arith.constant 0 : index
    %c0_4 = arith.constant 0 : index
    %3 = vector.load %arg6[%c0_3, %c0_4] : memref<1x64xf32, #tpu.memory_space<vmem>>, vector<1x64xf32>
    %4 = vector.broadcast %3 : vector<1x64xf32> to vector<8x64xf32>
    %5 = arith.addf %2, %4 : vector<8x64xf32>
    %c0_5 = arith.constant 0 : index
    %c0_6 = arith.constant 0 : index
    %6 = vector.load %arg2[%c0_5, %c0_6] : memref<8x64xbf16, #tpu.memory_space<vmem>>, vector<8x64xbf16>
    %c0_7 = arith.constant 0 : index
    %c0_8 = arith.constant 0 : index
    %7 = vector.load %arg7[%c0_7, %c0_8] : memref<64x64xbf16, #tpu.memory_space<vmem>>, vector<64x64xbf16>
    %cst_9 = arith.constant dense<0.000000e+00> : vector<8x64xf32>
    %8 = tpu.matmul %6, %7, %cst_9 {dimension_numbers = #tpu.dot_dimension_numbers<[1], [0], [0], [1], [0, 0, 1, 1], [], []>} : vector<8x64xbf16>, vector<64x64xbf16>, vector<8x64xf32> -> vector<8x64xf32>
    %c0_10 = arith.constant 0 : index
    %c0_11 = arith.constant 0 : index
    %9 = vector.load %arg8[%c0_10, %c0_11] : memref<1x64xf32, #tpu.memory_space<vmem>>, vector<1x64xf32>
    %10 = vector.broadcast %9 : vector<1x64xf32> to vector<8x64xf32>
    %11 = arith.addf %8, %10 : vector<8x64xf32>
    %c0_12 = arith.constant 0 : index
    %c0_13 = arith.constant 0 : index
    %12 = vector.load %arg3[%c0_12, %c0_13] : memref<8x640xbf16, #tpu.memory_space<vmem>>, vector<8x640xbf16>
    %c0_14 = arith.constant 0 : index
    %c0_15 = arith.constant 0 : index
    %13 = vector.load %arg9[%c0_14, %c0_15] : memref<640x64xbf16, #tpu.memory_space<vmem>>, vector<640x64xbf16>
    %cst_16 = arith.constant dense<0.000000e+00> : vector<8x64xf32>
    %14 = tpu.matmul %12, %13, %cst_16 {dimension_numbers = #tpu.dot_dimension_numbers<[1], [0], [0], [1], [0, 0, 1, 1], [], []>} : vector<8x640xbf16>, vector<640x64xbf16>, vector<8x64xf32> -> vector<8x64xf32>
    %c0_17 = arith.constant 0 : index
    %c0_18 = arith.constant 0 : index
    %15 = vector.load %arg10[%c0_17, %c0_18] : memref<1x64xf32, #tpu.memory_space<vmem>>, vector<1x64xf32>
    %16 = vector.broadcast %15 : vector<1x64xf32> to vector<8x64xf32>
    %17 = arith.addf %14, %16 : vector<8x64xf32>
    %c0_19 = arith.constant 0 : index
    %c0_20 = arith.constant 0 : index
    %18 = vector.load %arg4[%c0_19, %c0_20] : memref<8x1024xbf16, #tpu.memory_space<vmem>>, vector<8x1024xbf16>
    %c0_21 = arith.constant 0 : index
    %c0_22 = arith.constant 0 : index
    %19 = vector.load %arg11[%c0_21, %c0_22] : memref<1024x64xbf16, #tpu.memory_space<vmem>>, vector<1024x64xbf16>
    %cst_23 = arith.constant dense<0.000000e+00> : vector<8x64xf32>
    %20 = tpu.matmul %18, %19, %cst_23 {dimension_numbers = #tpu.dot_dimension_numbers<[1], [0], [0], [1], [0, 0, 1, 1], [], []>} : vector<8x1024xbf16>, vector<1024x64xbf16>, vector<8x64xf32> -> vector<8x64xf32>
    %c0_24 = arith.constant 0 : index
    %c0_25 = arith.constant 0 : index
    %21 = vector.load %arg12[%c0_24, %c0_25] : memref<1x64xf32, #tpu.memory_space<vmem>>, vector<1x64xf32>
    %22 = vector.broadcast %21 : vector<1x64xf32> to vector<8x64xf32>
    %23 = arith.addf %20, %22 : vector<8x64xf32>
    %24 = arith.truncf %5 : vector<8x64xf32> to vector<8x64xbf16>
    %c0_26 = arith.constant 0 : index
    %c0_27 = arith.constant 0 : index
    %25 = vector.load %arg13[%c0_26, %c0_27] : memref<64x128xbf16, #tpu.memory_space<vmem>>, vector<64x128xbf16>
    %cst_28 = arith.constant dense<0.000000e+00> : vector<8x128xf32>
    %26 = tpu.matmul %24, %25, %cst_28 {dimension_numbers = #tpu.dot_dimension_numbers<[1], [0], [0], [1], [0, 0, 1, 1], [], []>} : vector<8x64xbf16>, vector<64x128xbf16>, vector<8x128xf32> -> vector<8x128xf32>
    %27 = arith.truncf %11 : vector<8x64xf32> to vector<8x64xbf16>
    %c0_29 = arith.constant 0 : index
    %c0_30 = arith.constant 0 : index
    %28 = vector.load %arg14[%c0_29, %c0_30] : memref<64x128xbf16, #tpu.memory_space<vmem>>, vector<64x128xbf16>
    %cst_31 = arith.constant dense<0.000000e+00> : vector<8x128xf32>
    %29 = tpu.matmul %27, %28, %cst_31 {dimension_numbers = #tpu.dot_dimension_numbers<[1], [0], [0], [1], [0, 0, 1, 1], [], []>} : vector<8x64xbf16>, vector<64x128xbf16>, vector<8x128xf32> -> vector<8x128xf32>
    %30 = arith.addf %26, %29 : vector<8x128xf32>
    %31 = arith.truncf %17 : vector<8x64xf32> to vector<8x64xbf16>
    %c0_32 = arith.constant 0 : index
    %c0_33 = arith.constant 0 : index
    %32 = vector.load %arg15[%c0_32, %c0_33] : memref<64x128xbf16, #tpu.memory_space<vmem>>, vector<64x128xbf16>
    %cst_34 = arith.constant dense<0.000000e+00> : vector<8x128xf32>
    %33 = tpu.matmul %31, %32, %cst_34 {dimension_numbers = #tpu.dot_dimension_numbers<[1], [0], [0], [1], [0, 0, 1, 1], [], []>} : vector<8x64xbf16>, vector<64x128xbf16>, vector<8x128xf32> -> vector<8x128xf32>
    %34 = arith.addf %30, %33 : vector<8x128xf32>
    %35 = arith.truncf %23 : vector<8x64xf32> to vector<8x64xbf16>
    %c0_35 = arith.constant 0 : index
    %c0_36 = arith.constant 0 : index
    %36 = vector.load %arg16[%c0_35, %c0_36] : memref<64x128xbf16, #tpu.memory_space<vmem>>, vector<64x128xbf16>
    %cst_37 = arith.constant dense<0.000000e+00> : vector<8x128xf32>
    %37 = tpu.matmul %35, %36, %cst_37 {dimension_numbers = #tpu.dot_dimension_numbers<[1], [0], [0], [1], [0, 0, 1, 1], [], []>} : vector<8x64xbf16>, vector<64x128xbf16>, vector<8x128xf32> -> vector<8x128xf32>
    %38 = arith.addf %34, %37 : vector<8x128xf32>
    %c0_38 = arith.constant 0 : index
    %c0_39 = arith.constant 0 : index
    %39 = vector.load %arg17[%c0_38, %c0_39] : memref<1x128xf32, #tpu.memory_space<vmem>>, vector<1x128xf32>
    %40 = vector.broadcast %39 : vector<1x128xf32> to vector<8x128xf32>
    %41 = arith.addf %38, %40 : vector<8x128xf32>
    %cst_40 = arith.constant 0.000000e+00 : f32
    %42 = vector.broadcast %cst_40 : f32 to vector<8x128xf32>
    %43 = arith.maximumf %41, %42 : vector<8x128xf32>
    %44 = arith.mulf %43, %43 : vector<8x128xf32>
    %cst_41 = arith.constant dense<0.000000e+00> : vector<8xf32>
    %45 = vector.multi_reduction <add>, %44, %cst_41 [1] : vector<8x128xf32> to vector<8xf32>
    %46 = vector.shape_cast %45 : vector<8xf32> to vector<8x1xf32>
    %cst_42 = arith.constant 1.000000e-24 : f32
    %47 = vector.broadcast %cst_42 : f32 to vector<8x1xf32>
    %48 = arith.maximumf %46, %47 : vector<8x1xf32>
    %49 = math.rsqrt %48 : vector<8x1xf32>
    %50 = vector.broadcast %49 : vector<8x1xf32> to vector<8x128xf32>
    %51 = arith.mulf %43, %50 : vector<8x128xf32>
    %c0_43 = arith.constant 0 : index
    %c0_44 = arith.constant 0 : index
    %52 = vector.load %arg18[%c0_43, %c0_44] : memref<8x128xf32, #tpu.memory_space<vmem>>, vector<8x128xf32>
    tpu.vector_store %arg18[%c0_43, %c0_44], %51 {strides = array<i32>} : memref<8x128xf32, #tpu.memory_space<vmem>>, vector<8x128xf32>,
    return
  }
  func.func @transform_0(%arg0: i32) -> (i32, i32) {
    %c0_i32 = arith.constant 0 : i32
    %c0_i32_0 = arith.constant 0 : i32
    return %arg0, %c0_i32 : i32, i32
  }
  func.func @transform_1(%arg0: i32) -> (i32, i32) {
    %c0_i32 = arith.constant 0 : i32
    %c0_i32_0 = arith.constant 0 : i32
    return %arg0, %c0_i32 : i32, i32
  }
  func.func @transform_2(%arg0: i32) -> (i32, i32) {
    %c0_i32 = arith.constant 0 : i32
    %c0_i32_0 = arith.constant 0 : i32
    return %arg0, %c0_i32 : i32, i32
  }
  func.func @transform_3(%arg0: i32) -> (i32, i32) {
    %c0_i32 = arith.constant 0 : i32
    %c0_i32_0 = arith.constant 0 : i32
    return %arg0, %c0_i32 : i32, i32
  }
  func.func @transform_4(%arg0: i32) -> (i32, i32) {
    %c0_i32 = arith.constant 0 : i32
    %c0_i32_0 = arith.constant 0 : i32
    %c0_i32_1 = arith.constant 0 : i32
    return %c0_i32, %c0_i32_0 : i32, i32
  }
  func.func @transform_5(%arg0: i32) -> (i32, i32) {
    %c0_i32 = arith.constant 0 : i32
    %c0_i32_0 = arith.constant 0 : i32
    %c0_i32_1 = arith.constant 0 : i32
    return %c0_i32, %c0_i32_0 : i32, i32
  }
  func.func @transform_6(%arg0: i32) -> (i32, i32) {
    %c0_i32 = arith.constant 0 : i32
    %c0_i32_0 = arith.constant 0 : i32
    %c0_i32_1 = arith.constant 0 : i32
    return %c0_i32, %c0_i32_0 : i32, i32
  }
  func.func @transform_7(%arg0: i32) -> (i32, i32) {
    %c0_i32 = arith.constant 0 : i32
    %c0_i32_0 = arith.constant 0 : i32
    %c0_i32_1 = arith.constant 0 : i32
    return %c0_i32, %c0_i32_0 : i32, i32
  }
  func.func @transform_8(%arg0: i32) -> (i32, i32) {
    %c0_i32 = arith.constant 0 : i32
    %c0_i32_0 = arith.constant 0 : i32
    %c0_i32_1 = arith.constant 0 : i32
    return %c0_i32, %c0_i32_0 : i32, i32
  }
  func.func @transform_9(%arg0: i32) -> (i32, i32) {
    %c0_i32 = arith.constant 0 : i32
    %c0_i32_0 = arith.constant 0 : i32
    %c0_i32_1 = arith.constant 0 : i32
    return %c0_i32, %c0_i32_0 : i32, i32
  }
  func.func @transform_10(%arg0: i32) -> (i32, i32) {
    %c0_i32 = arith.constant 0 : i32
    %c0_i32_0 = arith.constant 0 : i32
    %c0_i32_1 = arith.constant 0 : i32
    return %c0_i32, %c0_i32_0 : i32, i32
  }
  func.func @transform_11(%arg0: i32) -> (i32, i32) {
    %c0_i32 = arith.constant 0 : i32
    %c0_i32_0 = arith.constant 0 : i32
    %c0_i32_1 = arith.constant 0 : i32
    return %c0_i32, %c0_i32_0 : i32, i32
  }
  func.func @transform_12(%arg0: i32) -> (i32, i32) {
    %c0_i32 = arith.constant 0 : i32
    %c0_i32_0 = arith.constant 0 : i32
    %c0_i32_1 = arith.constant 0 : i32
    return %c0_i32, %c0_i32_0 : i32, i32
  }
  func.func @transform_13(%arg0: i32) -> (i32, i32) {
    %c0_i32 = arith.constant 0 : i32
    %c0_i32_0 = arith.constant 0 : i32
    %c0_i32_1 = arith.constant 0 : i32
    return %c0_i32, %c0_i32_0 : i32, i32
  }
  func.func @transform_14(%arg0: i32) -> (i32, i32) {
    %c0_i32 = arith.constant 0 : i32
    %c0_i32_0 = arith.constant 0 : i32
    %c0_i32_1 = arith.constant 0 : i32
    return %c0_i32, %c0_i32_0 : i32, i32
  }
  func.func @transform_15(%arg0: i32) -> (i32, i32) {
    %c0_i32 = arith.constant 0 : i32
    %c0_i32_0 = arith.constant 0 : i32
    %c0_i32_1 = arith.constant 0 : i32
    return %c0_i32, %c0_i32_0 : i32, i32
  }
  func.func @transform_16(%arg0: i32) -> (i32, i32) {
    %c0_i32 = arith.constant 0 : i32
    %c0_i32_0 = arith.constant 0 : i32
    %c0_i32_1 = arith.constant 0 : i32
    return %c0_i32, %c0_i32_0 : i32, i32
  }
  func.func @transform_17(%arg0: i32) -> (i32, i32) {
    %c0_i32 = arith.constant 0 : i32
    %c0_i32_0 = arith.constant 0 : i32
    return %arg0, %c0_i32 : i32, i32
  }
}

</mosaic_0001>

<llo_original>
// kernel: combined_trinet_forward.1
$region0: #{combined_trinet_forward.1}
  #allocation0 [shape = 'u32[]', space=smem, size = 0x4, offset = 0x4, fixed_abs, tag = 'smem constant byte address 0x4 - core index']
  #allocation1 [shape = 'u32[144,128]{1,0:T(1,128)}', space=vmem, size = 0x12000, scoped, tag = 'internal scratch']
  %s0 = inlined_call_operand.vmem [shape: bf16[16,320], index: 0, kind: input, shape index: {}]
  %s1 = inlined_call_operand.vmem [shape: bf16[16,64], index: 1, kind: input, shape index: {}]
  %s2 = inlined_call_operand.vmem [shape: bf16[16,640], index: 2, kind: input, shape index: {}]
  %s3 = inlined_call_operand.vmem [shape: bf16[16,1024], index: 3, kind: input, shape index: {}]
  %s4 = inlined_call_operand.vmem [shape: bf16[320,64], index: 4, kind: input, shape index: {}]
  %s5 = inlined_call_operand.vmem [shape: f32[1,64], index: 5, kind: input, shape index: {}]
  %s6 = inlined_call_operand.vmem [shape: bf16[64,64], index: 6, kind: input, shape index: {}]
  %s7 = inlined_call_operand.vmem [shape: f32[1,64], index: 7, kind: input, shape index: {}]
  %s8 = inlined_call_operand.vmem [shape: bf16[640,64], index: 8, kind: input, shape index: {}]
  %s9 = inlined_call_operand.vmem [shape: f32[1,64], index: 9, kind: input, shape index: {}]
  %s10 = inlined_call_operand.vmem [shape: bf16[1024,64], index: 10, kind: input, shape index: {}]
  %s11 = inlined_call_operand.vmem [shape: f32[1,64], index: 11, kind: input, shape index: {}]
  %s12 = inlined_call_operand.vmem [shape: bf16[64,128], index: 12, kind: input, shape index: {}]
  %s13 = inlined_call_operand.vmem [shape: bf16[64,128], index: 13, kind: input, shape index: {}]
  %s14 = inlined_call_operand.vmem [shape: bf16[64,128], index: 14, kind: input, shape index: {}]
  %s15 = inlined_call_operand.vmem [shape: bf16[64,128], index: 15, kind: input, shape index: {}]
  %s16 = inlined_call_operand.vmem [shape: f32[1,128], index: 16, kind: input, shape index: {}]
  %s17 = inlined_call_operand.hbm [shape: f32[16,128], index: 17, kind: output, shape index: {}]
  %s18 = sld [smem:[#allocation0]]
  $region101: #{combined_trinet_forward.1} parent=0
    _
  %s20 = ssub.s32 1, %s18
  %s21 = scalar_select 0, %s20, %s18
  $region1: #{combined_trinet_forward.1} parent=0
    #allocation2 [shape = 'u8[8192]{0}', space=vmem, size = 0x2000, scoped, tag = 'output window, operand 0']
    #allocation3 [shape = 's32[2]{0}', space=sflag, size = 0x8, scoped, tag = 'scoped memory for combined_trinet_forward.1']
    %22 = vsyncpa [#allocation3], 0
    %s23 = scalar_lea.sflag [#allocation3], 1
    %24 = vsyncpa %s23, 0
    loop: start=0, step=1, limit=4
    $region2: #{combined_trinet_forward.1} parent=1 // loop_pre_header
      _
    $region3: #{combined_trinet_forward.1} parent=1 // loop_header
      %s26 = sphi 0, %s30
      %p27 = scmp.ge.s32.totalorder %s26, 4
      %s36 = sphi 0, %s38
      %s39 = sphi 0, %s36
      %s40 = sphi 0, %s39
      %s56 = sphi 0, %s40
      %s62 = sphi 0, %s64
      %s65 = sphi 0, %s62
      %s66 = sphi 0, %s65
      %s82 = sphi 0, %s66
      %s88 = sphi 0, %s90
      %s91 = sphi 0, %s88
      %s92 = sphi 0, %s91
      %s108 = sphi 0, %s92
      %s114 = sphi 0, %s116
      %s117 = sphi 0, %s114
      %s118 = sphi 0, %s117
      %s134 = sphi 0, %s118
      %s138 = sphi 0, %s138
      %s140 = sphi 0, %s138
      %s141 = sphi 0, %s140
      %s155 = sphi 0, %s141
      %s159 = sphi 0, %s159
      %s161 = sphi 0, %s159
      %s162 = sphi 0, %s161
      %s176 = sphi 0, %s162
      %s180 = sphi 0, %s180
      %s182 = sphi 0, %s180
      %s183 = sphi 0, %s182
      %s197 = sphi 0, %s183
      %s201 = sphi 0, %s201
      %s203 = sphi 0, %s201
      %s204 = sphi 0, %s203
      %s218 = sphi 0, %s204
      %s222 = sphi 0, %s222
      %s224 = sphi 0, %s222
      %s225 = sphi 0, %s224
      %s239 = sphi 0, %s225
      %s243 = sphi 0, %s243
      %s245 = sphi 0, %s243
      %s246 = sphi 0, %s245
      %s260 = sphi 0, %s246
      %s264 = sphi 0, %s264
      %s266 = sphi 0, %s264
      %s267 = sphi 0, %s266
      %s281 = sphi 0, %s267
      %s285 = sphi 0, %s285
      %s287 = sphi 0, %s285
      %s288 = sphi 0, %s287
      %s302 = sphi 0, %s288
      %s306 = sphi 0, %s306
      %s308 = sphi 0, %s306
      %s309 = sphi 0, %s308
      %s323 = sphi 0, %s309
      %s327 = sphi 0, %s327
      %s329 = sphi 0, %s327
      %s330 = sphi 0, %s329
      %s344 = sphi 0, %s330
      %s348 = sphi 0, %s348
      %s350 = sphi 0, %s348
      %s351 = sphi 0, %s350
      %s365 = sphi 0, %s351
      %s369 = sphi 0, %s369
      %s371 = sphi 0, %s369
      %s372 = sphi 0, %s371
      %s386 = sphi 0, %s372
      %s390 = sphi 0, %s390
      %s392 = sphi 0, %s390
      %s393 = sphi 0, %s392
      %s407 = sphi 0, %s393
      %s413 = sphi 0, %s415
      %s416 = sphi 0, %s413
      %s417 = sphi 0, %s416
      %s433 = sphi 0, %s417
    $region4: #{combined_trinet_forward.1} parent=1 // loop_header_branch
      %29 = sbr.rel (%p27) target = $region8
    $region5: #{combined_trinet_forward.1} parent=1 // loop_body
      %s31 = ssub.s32 %s26, 1
      %s32 = ssub.s32 %s26, 2
      %s33 = sadd.s32 %s26, 1
      %s34 = ssub.s32 %s26, %s33
      %p35 = scmp.eq.s32.totalorder %s34, 0
      %s37 = sadd.s32 %s36, 1
      %s38 = scalar_select %p35, %s36, %s37
      %p41 = pneg %p35
      %p42 = scmp.eq.s32.totalorder %s26, 1
      %p43 = por %p41, %p42
      %p44 = scmp.ne.s32.totalorder %s36, %s39
      %p45 = scmp.eq.s32.totalorder %s26, 0
      %p46 = por %p44, %p45
      %p47 = scmp.ne.s32.totalorder %s36, %s39
      %p48 = scmp.eq.s32.totalorder %s31, 1
      %p49 = por %p47, %p48
      %p50 = scmp.ne.s32.totalorder %s39, %s40
      %p51 = scmp.eq.s32.totalorder %s31, 0
      %p52 = por %p50, %p51
      %p53 = scmp.ne.s32.totalorder %s39, %s40
      %p54 = scmp.eq.s32.totalorder %s32, 1
      %p55 = por %p53, %p54
      %p57 = scmp.ne.s32.totalorder %s40, %s56
      %p58 = scmp.eq.s32.totalorder %s32, 0
      %p59 = por %p57, %p58
      %s60 = ssub.s32 %s26, %s33
      %p61 = scmp.eq.s32.totalorder %s60, 0
      %s63 = sadd.s32 %s62, 1
      %s64 = scalar_select %p61, %s62, %s63
      %p67 = pneg %p61
      %p68 = scmp.eq.s32.totalorder %s26, 1
      %p69 = por %p67, %p68
      %p70 = scmp.ne.s32.totalorder %s62, %s65
      %p71 = scmp.eq.s32.totalorder %s26, 0
      %p72 = por %p70, %p71
      %p73 = scmp.ne.s32.totalorder %s62, %s65
      %p74 = scmp.eq.s32.totalorder %s31, 1
      %p75 = por %p73, %p74
      %p76 = scmp.ne.s32.totalorder %s65, %s66
      %p77 = scmp.eq.s32.totalorder %s31, 0
      %p78 = por %p76, %p77
      %p79 = scmp.ne.s32.totalorder %s65, %s66
      %p80 = scmp.eq.s32.totalorder %s32, 1
      %p81 = por %p79, %p80
      %p83 = scmp.ne.s32.totalorder %s66, %s82
      %p84 = scmp.eq.s32.totalorder %s32, 0
      %p85 = por %p83, %p84
      %s86 = ssub.s32 %s26, %s33
      %p87 = scmp.eq.s32.totalorder %s86, 0
      %s89 = sadd.s32 %s88, 1
      %s90 = scalar_select %p87, %s88, %s89
      %p93 = pneg %p87
      %p94 = scmp.eq.s32.totalorder %s26, 1
      %p95 = por %p93, %p94
      %p96 = scmp.ne.s32.totalorder %s88, %s91
      %p97 = scmp.eq.s32.totalorder %s26, 0
      %p98 = por %p96, %p97
      %p99 = scmp.ne.s32.totalorder %s88, %s91
      %p100 = scmp.eq.s32.totalorder %s31, 1
      %p101 = por %p99, %p100
      %p102 = scmp.ne.s32.totalorder %s91, %s92
      %p103 = scmp.eq.s32.totalorder %s31, 0
      %p104 = por %p102, %p103
      %p105 = scmp.ne.s32.totalorder %s91, %s92
      %p106 = scmp.eq.s32.totalorder %s32, 1
      %p107 = por %p105, %p106
      %p109 = scmp.ne.s32.totalorder %s92, %s108
      %p110 = scmp.eq.s32.totalorder %s32, 0
      %p111 = por %p109, %p110
      %s112 = ssub.s32 %s26, %s33
      %p113 = scmp.eq.s32.totalorder %s112, 0
      %s115 = sadd.s32 %s114, 1
      %s116 = scalar_select %p113, %s114, %s115
      %p119 = pneg %p113
      %p120 = scmp.eq.s32.totalorder %s26, 1
      %p121 = por %p119, %p120
      %p122 = scmp.ne.s32.totalorder %s114, %s117
      %p123 = scmp.eq.s32.totalorder %s26, 0
      %p124 = por %p122, %p123
      %p125 = scmp.ne.s32.totalorder %s114, %s117
      %p126 = scmp.eq.s32.totalorder %s31, 1
      %p127 = por %p125, %p126
      %p128 = scmp.ne.s32.totalorder %s117, %s118
      %p129 = scmp.eq.s32.totalorder %s31, 0
      %p130 = por %p128, %p129
      %p131 = scmp.ne.s32.totalorder %s117, %s118
      %p132 = scmp.eq.s32.totalorder %s32, 1
      %p133 = por %p131, %p132
      %p135 = scmp.ne.s32.totalorder %s118, %s134
      %p136 = scmp.eq.s32.totalorder %s32, 0
      %p137 = por %p135, %p136
      %s139 = sadd.s32 %s138, 1
      %p142 = scmp.eq.s32.totalorder %s26, 1
      %p143 = scmp.ne.s32.totalorder %s138, %s140
      %p144 = scmp.eq.s32.totalorder %s26, 0
      %p145 = por %p143, %p144
      %p146 = scmp.ne.s32.totalorder %s138, %s140
      %p147 = scmp.eq.s32.totalorder %s31, 1
      %p148 = por %p146, %p147
      %p149 = scmp.ne.s32.totalorder %s140, %s141
      %p150 = scmp.eq.s32.totalorder %s31, 0
      %p151 = por %p149, %p150
      %p152 = scmp.ne.s32.totalorder %s140, %s141
      %p153 = scmp.eq.s32.totalorder %s32, 1
      %p154 = por %p152, %p153
      %p156 = scmp.ne.s32.totalorder %s141, %s155
      %p157 = scmp.eq.s32.totalorder %s32, 0
      %p158 = por %p156, %p157
      %s160 = sadd.s32 %s159, 1
      %p163 = scmp.eq.s32.totalorder %s26, 1
      %p164 = scmp.ne.s32.totalorder %s159, %s161
      %p165 = scmp.eq.s32.totalorder %s26, 0
      %p166 = por %p164, %p165
      %p167 = scmp.ne.s32.totalorder %s159, %s161
      %p168 = scmp.eq.s32.totalorder %s31, 1
      %p169 = por %p167, %p168
      %p170 = scmp.ne.s32.totalorder %s161, %s162
      %p171 = scmp.eq.s32.totalorder %s31, 0
      %p172 = por %p170, %p171
      %p173 = scmp.ne.s32.totalorder %s161, %s162
      %p174 = scmp.eq.s32.totalorder %s32, 1
      %p175 = por %p173, %p174
      %p177 = scmp.ne.s32.totalorder %s162, %s176
      %p178 = scmp.eq.s32.totalorder %s32, 0
      %p179 = por %p177, %p178
      %s181 = sadd.s32 %s180, 1
      %p184 = scmp.eq.s32.totalorder %s26, 1
      %p185 = scmp.ne.s32.totalorder %s180, %s182
      %p186 = scmp.eq.s32.totalorder %s26, 0
      %p187 = por %p185, %p186
      %p188 = scmp.ne.s32.totalorder %s180, %s182
      %p189 = scmp.eq.s32.totalorder %s31, 1
      %p190 = por %p188, %p189
      %p191 = scmp.ne.s32.totalorder %s182, %s183
      %p192 = scmp.eq.s32.totalorder %s31, 0
      %p193 = por %p191, %p192
      %p194 = scmp.ne.s32.totalorder %s182, %s183
      %p195 = scmp.eq.s32.totalorder %s32, 1
      %p196 = por %p194, %p195
      %p198 = scmp.ne.s32.totalorder %s183, %s197
      %p199 = scmp.eq.s32.totalorder %s32, 0
      %p200 = por %p198, %p199
      %s202 = sadd.s32 %s201, 1
      %p205 = scmp.eq.s32.totalorder %s26, 1
      %p206 = scmp.ne.s32.totalorder %s201, %s203
      %p207 = scmp.eq.s32.totalorder %s26, 0
      %p208 = por %p206, %p207
      %p209 = scmp.ne.s32.totalorder %s201, %s203
      %p210 = scmp.eq.s32.totalorder %s31, 1
      %p211 = por %p209, %p210
      %p212 = scmp.ne.s32.totalorder %s203, %s204
      %p213 = scmp.eq.s32.totalorder %s31, 0
      %p214 = por %p212, %p213
      %p215 = scmp.ne.s32.totalorder %s203, %s204
      %p216 = scmp.eq.s32.totalorder %s32, 1
      %p217 = por %p215, %p216
      %p219 = scmp.ne.s32.totalorder %s204, %s218
      %p220 = scmp.eq.s32.totalorder %s32, 0
      %p221 = por %p219, %p220
      %s223 = sadd.s32 %s222, 1
      %p226 = scmp.eq.s32.totalorder %s26, 1
      %p227 = scmp.ne.s32.totalorder %s222, %s224
      %p228 = scmp.eq.s32.totalorder %s26, 0
      %p229 = por %p227, %p228
      %p230 = scmp.ne.s32.totalorder %s222, %s224
      %p231 = scmp.eq.s32.totalorder %s31, 1
      %p232 = por %p230, %p231
      %p233 = scmp.ne.s32.totalorder %s224, %s225
      %p234 = scmp.eq.s32.totalorder %s31, 0
      %p235 = por %p233, %p234
      %p236 = scmp.ne.s32.totalorder %s224, %s225
      %p237 = scmp.eq.s32.totalorder %s32, 1
      %p238 = por %p236, %p237
      %p240 = scmp.ne.s32.totalorder %s225, %s239
      %p241 = scmp.eq.s32.totalorder %s32, 0
      %p242 = por %p240, %p241
      %s244 = sadd.s32 %s243, 1
      %p247 = scmp.eq.s32.totalorder %s26, 1
      %p248 = scmp.ne.s32.totalorder %s243, %s245
      %p249 = scmp.eq.s32.totalorder %s26, 0
      %p250 = por %p248, %p249
      %p251 = scmp.ne.s32.totalorder %s243, %s245
      %p252 = scmp.eq.s32.totalorder %s31, 1
      %p253 = por %p251, %p252
      %p254 = scmp.ne.s32.totalorder %s245, %s246
      %p255 = scmp.eq.s32.totalorder %s31, 0
      %p256 = por %p254, %p255
      %p257 = scmp.ne.s32.totalorder %s245, %s246
      %p258 = scmp.eq.s32.totalorder %s32, 1
      %p259 = por %p257, %p258
      %p261 = scmp.ne.s32.totalorder %s246, %s260
      %p262 = scmp.eq.s32.totalorder %s32, 0
      %p263 = por %p261, %p262
      %s265 = sadd.s32 %s264, 1
      %p268 = scmp.eq.s32.totalorder %s26, 1
      %p269 = scmp.ne.s32.totalorder %s264, %s266
      %p270 = scmp.eq.s32.totalorder %s26, 0
      %p271 = por %p269, %p270
      %p272 = scmp.ne.s32.totalorder %s264, %s266
      %p273 = scmp.eq.s32.totalorder %s31, 1
      %p274 = por %p272, %p273
      %p275 = scmp.ne.s32.totalorder %s266, %s267
      %p276 = scmp.eq.s32.totalorder %s31, 0
      %p277 = por %p275, %p276
      %p278 = scmp.ne.s32.totalorder %s266, %s267
      %p279 = scmp.eq.s32.totalorder %s32, 1
      %p280 = por %p278, %p279
      %p282 = scmp.ne.s32.totalorder %s267, %s281
      %p283 = scmp.eq.s32.totalorder %s32, 0
      %p284 = por %p282, %p283
      %s286 = sadd.s32 %s285, 1
      %p289 = scmp.eq.s32.totalorder %s26, 1
      %p290 = scmp.ne.s32.totalorder %s285, %s287
      %p291 = scmp.eq.s32.totalorder %s26, 0
      %p292 = por %p290, %p291
      %p293 = scmp.ne.s32.totalorder %s285, %s287
      %p294 = scmp.eq.s32.totalorder %s31, 1
      %p295 = por %p293, %p294
      %p296 = scmp.ne.s32.totalorder %s287, %s288
      %p297 = scmp.eq.s32.totalorder %s31, 0
      %p298 = por %p296, %p297
      %p299 = scmp.ne.s32.totalorder %s287, %s288
      %p300 = scmp.eq.s32.totalorder %s32, 1
      %p301 = por %p299, %p300
      %p303 = scmp.ne.s32.totalorder %s288, %s302
      %p304 = scmp.eq.s32.totalorder %s32, 0
      %p305 = por %p303, %p304
      %s307 = sadd.s32 %s306, 1
      %p310 = scmp.eq.s32.totalorder %s26, 1
      %p311 = scmp.ne.s32.totalorder %s306, %s308
      %p312 = scmp.eq.s32.totalorder %s26, 0
      %p313 = por %p311, %p312
      %p314 = scmp.ne.s32.totalorder %s306, %s308
      %p315 = scmp.eq.s32.totalorder %s31, 1
      %p316 = por %p314, %p315
      %p317 = scmp.ne.s32.totalorder %s308, %s309
      %p318 = scmp.eq.s32.totalorder %s31, 0
      %p319 = por %p317, %p318
      %p320 = scmp.ne.s32.totalorder %s308, %s309
      %p321 = scmp.eq.s32.totalorder %s32, 1
      %p322 = por %p320, %p321
      %p324 = scmp.ne.s32.totalorder %s309, %s323
      %p325 = scmp.eq.s32.totalorder %s32, 0
      %p326 = por %p324, %p325
      %s328 = sadd.s32 %s327, 1
      %p331 = scmp.eq.s32.totalorder %s26, 1
      %p332 = scmp.ne.s32.totalorder %s327, %s329
      %p333 = scmp.eq.s32.totalorder %s26, 0
      %p334 = por %p332, %p333
      %p335 = scmp.ne.s32.totalorder %s327, %s329
      %p336 = scmp.eq.s32.totalorder %s31, 1
      %p337 = por %p335, %p336
      %p338 = scmp.ne.s32.totalorder %s329, %s330
      %p339 = scmp.eq.s32.totalorder %s31, 0
      %p340 = por %p338, %p339
      %p341 = scmp.ne.s32.totalorder %s329, %s330
      %p342 = scmp.eq.s32.totalorder %s32, 1
      %p343 = por %p341, %p342
      %p345 = scmp.ne.s32.totalorder %s330, %s344
      %p346 = scmp.eq.s32.totalorder %s32, 0
      %p347 = por %p345, %p346
      %s349 = sadd.s32 %s348, 1
      %p352 = scmp.eq.s32.totalorder %s26, 1
      %p353 = scmp.ne.s32.totalorder %s348, %s350
      %p354 = scmp.eq.s32.totalorder %s26, 0
      %p355 = por %p353, %p354
      %p356 = scmp.ne.s32.totalorder %s348, %s350
      %p357 = scmp.eq.s32.totalorder %s31, 1
      %p358 = por %p356, %p357
      %p359 = scmp.ne.s32.totalorder %s350, %s351
      %p360 = scmp.eq.s32.totalorder %s31, 0
      %p361 = por %p359, %p360
      %p362 = scmp.ne.s32.totalorder %s350, %s351
      %p363 = scmp.eq.s32.totalorder %s32, 1
      %p364 = por %p362, %p363
      %p366 = scmp.ne.s32.totalorder %s351, %s365
      %p367 = scmp.eq.s32.totalorder %s32, 0
      %p368 = por %p366, %p367
      %s370 = sadd.s32 %s369, 1
      %p373 = scmp.eq.s32.totalorder %s26, 1
      %p374 = scmp.ne.s32.totalorder %s369, %s371
      %p375 = scmp.eq.s32.totalorder %s26, 0
      %p376 = por %p374, %p375
      %p377 = scmp.ne.s32.totalorder %s369, %s371
      %p378 = scmp.eq.s32.totalorder %s31, 1
      %p379 = por %p377, %p378
      %p380 = scmp.ne.s32.totalorder %s371, %s372
      %p381 = scmp.eq.s32.totalorder %s31, 0
      %p382 = por %p380, %p381
      %p383 = scmp.ne.s32.totalorder %s371, %s372
      %p384 = scmp.eq.s32.totalorder %s32, 1
      %p385 = por %p383, %p384
      %p387 = scmp.ne.s32.totalorder %s372, %s386
      %p388 = scmp.eq.s32.totalorder %s32, 0
      %p389 = por %p387, %p388
      %s391 = sadd.s32 %s390, 1
      %p394 = scmp.eq.s32.totalorder %s26, 1
      %p395 = scmp.ne.s32.totalorder %s390, %s392
      %p396 = scmp.eq.s32.totalorder %s26, 0
      %p397 = por %p395, %p396
      %p398 = scmp.ne.s32.totalorder %s390, %s392
      %p399 = scmp.eq.s32.totalorder %s31, 1
      %p400 = por %p398, %p399
      %p401 = scmp.ne.s32.totalorder %s392, %s393
      %p402 = scmp.eq.s32.totalorder %s31, 0
      %p403 = por %p401, %p402
      %p404 = scmp.ne.s32.totalorder %s392, %s393
      %p405 = scmp.eq.s32.totalorder %s32, 1
      %p406 = por %p404, %p405
      %p408 = scmp.ne.s32.totalorder %s393, %s407
      %p409 = scmp.eq.s32.totalorder %s32, 0
      %p410 = por %p408, %p409
      %s411 = ssub.s32 %s26, %s33
      %p412 = scmp.eq.s32.totalorder %s411, 0
      %s414 = sadd.s32 %s413, 1
      %s415 = scalar_select %p412, %s413, %s414
      %p418 = pneg %p412
      %p419 = scmp.eq.s32.totalorder %s26, 1
      %p420 = por %p418, %p419
      %p421 = scmp.ne.s32.totalorder %s413, %s416
      %p422 = scmp.eq.s32.totalorder %s26, 0
      %p423 = por %p421, %p422
      %p424 = scmp.ne.s32.totalorder %s413, %s416
      %p425 = scmp.eq.s32.totalorder %s31, 1
      %p426 = por %p424, %p425
      %p427 = scmp.ne.s32.totalorder %s416, %s417
      %p428 = scmp.eq.s32.totalorder %s31, 0
      %p429 = por %p427, %p428
      %p430 = scmp.ne.s32.totalorder %s416, %s417
      %p431 = scmp.eq.s32.totalorder %s32, 1
      %p432 = por %p430, %p431
      %p434 = scmp.ne.s32.totalorder %s417, %s433
      %p435 = scmp.eq.s32.totalorder %s32, 0
      %p436 = por %p434, %p435
      %p437 = scmp.le.s32.totalorder 1, %s26
      %p438 = scmp.lt.s32.totalorder %s26, 3
      %p439 = pnand %p437, %p438
      %p440 = pneg %p439
      // Predicated region
      $region9: #{combined_trinet_forward.1} parent=5 // pred_check
        _
      $region10: #{combined_trinet_forward.1} parent=5 // pred_check_branch
        %442 = sbr.rel (%p439) target = $region12
      $region11: #{combined_trinet_forward.1} parent=5 // pred_region
        %s443 = ssub.s32 %s26, 1
        // Predicated region
        $region13: #{combined_trinet_forward.1} parent=11 // pred_check
          %p444 = pneg %p151
        $region14: #{combined_trinet_forward.1} parent=11 // pred_check_branch
          %446 = sbr.rel (%p444) target = $region16
        $region15: #{combined_trinet_forward.1} parent=11 // pred_region
          _
        $region16: #{combined_trinet_forward.1} parent=11 // pred_fallthru
          _
        // Predicated region
        $region17: #{combined_trinet_forward.1} parent=11 // pred_check
          %p447 = pneg %p172
        $region18: #{combined_trinet_forward.1} parent=11 // pred_check_branch
          %449 = sbr.rel (%p447) target = $region20
        $region19: #{combined_trinet_forward.1} parent=11 // pred_region
          _
        $region20: #{combined_trinet_forward.1} parent=11 // pred_fallthru
          _
        // Predicated region
        $region21: #{combined_trinet_forward.1} parent=11 // pred_check
          %p450 = pneg %p193
        $region22: #{combined_trinet_forward.1} parent=11 // pred_check_branch
          %452 = sbr.rel (%p450) target = $region24
        $region23: #{combined_trinet_forward.1} parent=11 // pred_region
          _
        $region24: #{combined_trinet_forward.1} parent=11 // pred_fallthru
          _
        // Predicated region
        $region25: #{combined_trinet_forward.1} parent=11 // pred_check
          %p453 = pneg %p214
        $region26: #{combined_trinet_forward.1} parent=11 // pred_check_branch
          %455 = sbr.rel (%p453) target = $region28
        $region27: #{combined_trinet_forward.1} parent=11 // pred_region
          _
        $region28: #{combined_trinet_forward.1} parent=11 // pred_fallthru
          _
        // Predicated region
        $region29: #{combined_trinet_forward.1} parent=11 // pred_check
          %p456 = pneg %p235
        $region30: #{combined_trinet_forward.1} parent=11 // pred_check_branch
          %458 = sbr.rel (%p456) target = $region32
        $region31: #{combined_trinet_forward.1} parent=11 // pred_region
          _
        $region32: #{combined_trinet_forward.1} parent=11 // pred_fallthru
          _
        // Predicated region
        $region33: #{combined_trinet_forward.1} parent=11 // pred_check
          %p459 = pneg %p256
        $region34: #{combined_trinet_forward.1} parent=11 // pred_check_branch
          %461 = sbr.rel (%p459) target = $region36
        $region35: #{combined_trinet_forward.1} parent=11 // pred_region
          _
        $region36: #{combined_trinet_forward.1} parent=11 // pred_fallthru
          _
        // Predicated region
        $region37: #{combined_trinet_forward.1} parent=11 // pred_check
          %p462 = pneg %p277
        $region38: #{combined_trinet_forward.1} parent=11 // pred_check_branch
          %464 = sbr.rel (%p462) target = $region40
        $region39: #{combined_trinet_forward.1} parent=11 // pred_region
          _
        $region40: #{combined_trinet_forward.1} parent=11 // pred_fallthru
          _
        // Predicated region
        $region41: #{combined_trinet_forward.1} parent=11 // pred_check
          %p465 = pneg %p298
        $region42: #{combined_trinet_forward.1} parent=11 // pred_check_branch
          %467 = sbr.rel (%p465) target = $region44
        $region43: #{combined_trinet_forward.1} parent=11 // pred_region
          _
        $region44: #{combined_trinet_forward.1} parent=11 // pred_fallthru
          _
        // Predicated region
        $region45: #{combined_trinet_forward.1} parent=11 // pred_check
          %p468 = pneg %p319
        $region46: #{combined_trinet_forward.1} parent=11 // pred_check_branch
          %470 = sbr.rel (%p468) target = $region48
        $region47: #{combined_trinet_forward.1} parent=11 // pred_region
          _
        $region48: #{combined_trinet_forward.1} parent=11 // pred_fallthru
          _
        // Predicated region
        $region49: #{combined_trinet_forward.1} parent=11 // pred_check
          %p471 = pneg %p340
        $region50: #{combined_trinet_forward.1} parent=11 // pred_check_branch
          %473 = sbr.rel (%p471) target = $region52
        $region51: #{combined_trinet_forward.1} parent=11 // pred_region
          _
        $region52: #{combined_trinet_forward.1} parent=11 // pred_fallthru
          _
        // Predicated region
        $region53: #{combined_trinet_forward.1} parent=11 // pred_check
          %p474 = pneg %p361
        $region54: #{combined_trinet_forward.1} parent=11 // pred_check_branch
          %476 = sbr.rel (%p474) target = $region56
        $region55: #{combined_trinet_forward.1} parent=11 // pred_region
          _
        $region56: #{combined_trinet_forward.1} parent=11 // pred_fallthru
          _
        // Predicated region
        $region57: #{combined_trinet_forward.1} parent=11 // pred_check
          %p477 = pneg %p382
        $region58: #{combined_trinet_forward.1} parent=11 // pred_check_branch
          %479 = sbr.rel (%p477) target = $region60
        $region59: #{combined_trinet_forward.1} parent=11 // pred_region
          _
        $region60: #{combined_trinet_forward.1} parent=11 // pred_fallthru
          _
        // Predicated region
        $region61: #{combined_trinet_forward.1} parent=11 // pred_check
          %p480 = pneg %p403
        $region62: #{combined_trinet_forward.1} parent=11 // pred_check_branch
          %482 = sbr.rel (%p480) target = $region64
        $region63: #{combined_trinet_forward.1} parent=11 // pred_region
          _
        $region64: #{combined_trinet_forward.1} parent=11 // pred_fallthru
          _
      $region12: #{combined_trinet_forward.1} parent=5 // pred_fallthru
        _
      %p483 = scmp.lt.s32.totalorder %s26, 2
      // Predicated region
      $region65: #{combined_trinet_forward.1} parent=5 // pred_check
        %p484 = pneg %p483
      $region66: #{combined_trinet_forward.1} parent=5 // pred_check_branch
        %486 = sbr.rel (%p484) target = $region68
      $region67: #{combined_trinet_forward.1} parent=5 // pred_region
        // Predicated region
        $region69: #{combined_trinet_forward.1} parent=67 // pred_check
          %p487 = pneg %p46
        $region70: #{combined_trinet_forward.1} parent=67 // pred_check_branch
          %489 = sbr.rel (%p487) target = $region72
        $region71: #{combined_trinet_forward.1} parent=67 // pred_region
          %p490 = scmp.lt.s32.totalorder %s26, 1
          %s491 = scalar_select %p490, %s26, 1
          %s492 = smul.addr %s491, 3
          %s493 = smul.addr %s492, 4
          %s494 = scalar_lea.vmem %s0, %s493
        $region72: #{combined_trinet_forward.1} parent=67 // pred_fallthru
          _
        // Predicated region
        $region73: #{combined_trinet_forward.1} parent=67 // pred_check
          %p495 = pneg %p72
        $region74: #{combined_trinet_forward.1} parent=67 // pred_check_branch
          %497 = sbr.rel (%p495) target = $region76
        $region75: #{combined_trinet_forward.1} parent=67 // pred_region
          %p498 = scmp.lt.s32.totalorder %s26, 1
          %s499 = scalar_select %p498, %s26, 1
          %s500 = smul.addr %s499, 4
          %s501 = scalar_lea.vmem %s1, %s500
        $region76: #{combined_trinet_forward.1} parent=67 // pred_fallthru
          _
        // Predicated region
        $region77: #{combined_trinet_forward.1} parent=67 // pred_check
          %p502 = pneg %p98
        $region78: #{combined_trinet_forward.1} parent=67 // pred_check_branch
          %504 = sbr.rel (%p502) target = $region80
        $region79: #{combined_trinet_forward.1} parent=67 // pred_region
          %p505 = scmp.lt.s32.totalorder %s26, 1
          %s506 = scalar_select %p505, %s26, 1
          %s507 = smul.addr %s506, 5
          %s508 = smul.addr %s507, 4
          %s509 = scalar_lea.vmem %s2, %s508
        $region80: #{combined_trinet_forward.1} parent=67 // pred_fallthru
          _
        // Predicated region
        $region81: #{combined_trinet_forward.1} parent=67 // pred_check
          %p510 = pneg %p124
        $region82: #{combined_trinet_forward.1} parent=67 // pred_check_branch
          %512 = sbr.rel (%p510) target = $region84
        $region83: #{combined_trinet_forward.1} parent=67 // pred_region
          %p513 = scmp.lt.s32.totalorder %s26, 1
          %s514 = scalar_select %p513, %s26, 1
          %s515 = smul.addr %s514, 8
          %s516 = smul.addr %s515, 4
          %s517 = scalar_lea.vmem %s3, %s516
        $region84: #{combined_trinet_forward.1} parent=67 // pred_fallthru
          _
      $region68: #{combined_trinet_forward.1} parent=5 // pred_fallthru
        _
      %p518 = scmp.le.s32.totalorder 1, %s26
      %p519 = scmp.lt.s32.totalorder %s26, 3
      %p520 = pnand %p518, %p519
      %p521 = pneg %p520
      // Predicated region
      $region85: #{combined_trinet_forward.1} parent=5 // pred_check
        _
      $region86: #{combined_trinet_forward.1} parent=5 // pred_check_branch
        %523 = sbr.rel (%p520) target = $region88
      $region87: #{combined_trinet_forward.1} parent=5 // pred_region
        %s524 = ssub.s32 %s26, 1
        %p525 = scmp.lt.s32.totalorder %s31, 1
        %s526 = scalar_select %p525, %s31, 1
        %s527 = smul.addr %s526, 3
        %s528 = smul.addr %s527, 4
        %s529 = scalar_lea.vmem %s0, %s528
        %p530 = pneg %p52
        %p531 = pneg %p49
        %p532 = scmp.lt.s32.totalorder %s31, 1
        %s533 = scalar_select %p532, %s31, 1
        %s534 = smul.addr %s533, 4
        %s535 = scalar_lea.vmem %s1, %s534
        %p536 = pneg %p78
        %p537 = pneg %p75
        %p538 = scmp.lt.s32.totalorder %s31, 1
        %s539 = scalar_select %p538, %s31, 1
        %s540 = smul.addr %s539, 5
        %s541 = smul.addr %s540, 4
        %s542 = scalar_lea.vmem %s2, %s541
        %p543 = pneg %p104
        %p544 = pneg %p101
        %p545 = scmp.lt.s32.totalorder %s31, 1
        %s546 = scalar_select %p545, %s31, 1
        %s547 = smul.addr %s546, 8
        %s548 = smul.addr %s547, 4
        %s549 = scalar_lea.vmem %s3, %s548
        %p550 = pneg %p130
        %p551 = pneg %p127
        %p552 = pneg %p151
        %p553 = pneg %p148
        %p554 = pneg %p172
        %p555 = pneg %p169
        %p556 = pneg %p193
        %p557 = pneg %p190
        %p558 = pneg %p214
        %p559 = pneg %p211
        %p560 = pneg %p235
        %p561 = pneg %p232
        %p562 = pneg %p256
        %p563 = pneg %p253
        %p564 = pneg %p277
        %p565 = pneg %p274
        %p566 = pneg %p298
        %p567 = pneg %p295
        %p568 = pneg %p319
        %p569 = pneg %p316
        %p570 = pneg %p340
        %p571 = pneg %p337
        %p572 = pneg %p361
        %p573 = pneg %p358
        %p574 = pneg %p382
        %p575 = pneg %p379
        %p576 = pneg %p403
        %p577 = pneg %p400
        %p578 = pneg %p429
        %p579 = pneg %p426
        %s580 = sand.u32 %s416, 1
        %s581 = scalar_lea.sflag [#allocation3], %s580
        %s582 = sand.u32 %s416, 1
        %s583 = smul.addr %s582, 8
        %s584 = scalar_lea.vmem [#allocation2], %s583
        %p585 = scmp.lt.s32.totalorder %s31, 1
        %s586 = scalar_select %p585, %s31, 1
        %s587 = smul.addr %s586, 3
        %s588 = smul.addr %s587, 4
        %s589 = scalar_lea.vmem %s0, %s588
        %p590 = scmp.lt.s32.totalorder %s31, 1
        %s591 = scalar_select %p590, %s31, 1
        %s592 = smul.addr %s591, 4
        %s593 = scalar_lea.vmem %s1, %s592
        %p594 = scmp.lt.s32.totalorder %s31, 1
        %s595 = scalar_select %p594, %s31, 1
        %s596 = smul.addr %s595, 5
        %s597 = smul.addr %s596, 4
        %s598 = scalar_lea.vmem %s2, %s597
        %p599 = scmp.lt.s32.totalorder %s31, 1
        %s600 = scalar_select %p599, %s31, 1
        %s601 = smul.addr %s600, 8
        %s602 = smul.addr %s601, 4
        %s603 = scalar_lea.vmem %s3, %s602
        %v605 = vld [vmem:[%s589] sm:$0xff]
        %v606 = vld [vmem:[%s589 + $0x8] sm:$0xf]
        %v607 = vld [vmem:[%s4] sm:$0xf]
        %v608 = vld [vmem:[%s4 + $0x4] sm:$0xf]
        %v609 = vld [vmem:[%s4 + $0x8] sm:$0xf]
        %v610 = vld [vmem:[%s4 + $0xc] sm:$0xf]
        %v611 = vld [vmem:[%s4 + $0x10] sm:$0xf]
        %v612 = vld [vmem:[%s4 + $0x14] sm:$0xf]
        %v613 = vld [vmem:[%s4 + $0x18] sm:$0xf]
        %v614 = vld [vmem:[%s4 + $0x1c] sm:$0xf]
        %v615 = vld [vmem:[%s4 + $0x20] sm:$0xf]
        %v616 = vld [vmem:[%s4 + $0x24] sm:$0xf]
        %v617 = vld [vmem:[%s4 + $0x28] sm:$0xf]
        %v618 = vld [vmem:[%s4 + $0x2c] sm:$0xf]
        %v619 = vld [vmem:[%s4 + $0x30] sm:$0xf]
        %v620 = vld [vmem:[%s4 + $0x34] sm:$0xf]
        %v621 = vld [vmem:[%s4 + $0x38] sm:$0xf]
        %v622 = vld [vmem:[%s4 + $0x3c] sm:$0xf]
        %v623 = vld [vmem:[%s4 + $0x40] sm:$0xf]
        %v624 = vld [vmem:[%s4 + $0x44] sm:$0xf]
        %v625 = vld [vmem:[%s4 + $0x48] sm:$0xf]
        %v626 = vld [vmem:[%s4 + $0x4c] sm:$0xf]
        %v627 = vld [vmem:[%s4 + $0x50] sm:$0xf]
        %v628 = vld [vmem:[%s4 + $0x54] sm:$0xf]
        %v629 = vld [vmem:[%s4 + $0x58] sm:$0xf]
        %v630 = vld [vmem:[%s4 + $0x5c] sm:$0xf]
        %v631 = vld [vmem:[%s4 + $0x60] sm:$0xf]
        %v632 = vld [vmem:[%s4 + $0x64] sm:$0xf]
        %v633 = vld [vmem:[%s4 + $0x68] sm:$0xf]
        %v634 = vld [vmem:[%s4 + $0x6c] sm:$0xf]
        %v635 = vld [vmem:[%s4 + $0x70] sm:$0xf]
        %v636 = vld [vmem:[%s4 + $0x74] sm:$0xf]
        %v637 = vld [vmem:[%s4 + $0x78] sm:$0xf]
        %v638 = vld [vmem:[%s4 + $0x7c] sm:$0xf]
        %v639 = vld [vmem:[%s4 + $0x80] sm:$0xf]
        %v640 = vld [vmem:[%s4 + $0x84] sm:$0xf]
        %v641 = vld [vmem:[%s4 + $0x88] sm:$0xf]
        %v642 = vld [vmem:[%s4 + $0x8c] sm:$0xf]
        %v643 = vld [vmem:[%s4 + $0x90] sm:$0xf]
        %v644 = vld [vmem:[%s4 + $0x94] sm:$0xf]
        %v645 = vld [vmem:[%s4 + $0x98] sm:$0xf]
        %v646 = vld [vmem:[%s4 + $0x9c] sm:$0xf]
        %v647 = vld [vmem:[%s5] sm:$0x1]
        %v649 = vlaneseq
        %v650 = vshrl.u32 %v649, 7
        %v651 = vsub.s32 0, %v650
        %v652 = vrot.slane %v647, %v651
        %v656 = vunpack.c.l.b16 %v605
        %v657 = vunpack.c.h.b16 %v605
        %v658 = vunpack.c.l.b16 %v606
        %v659 = vpack.c.b16 %v656, %v656
        %v660 = vpack.c.b16 %v657, %v657
        %v661 = vpack.c.b16 %v658, %v658
        %v704 = vunpack.c.l.b16 %v607
        %v705 = vunpack.c.l.b16 %v608
        %v706 = vunpack.c.l.b16 %v609
        %v707 = vunpack.c.l.b16 %v610
        %v708 = vunpack.c.l.b16 %v611
        %v709 = vunpack.c.l.b16 %v612
        %v710 = vunpack.c.l.b16 %v613
        %v711 = vunpack.c.l.b16 %v614
        %v712 = vunpack.c.l.b16 %v615
        %v713 = vunpack.c.l.b16 %v616
        %v714 = vunpack.c.l.b16 %v617
        %v715 = vunpack.c.l.b16 %v618
        %v716 = vunpack.c.l.b16 %v619
        %v717 = vunpack.c.l.b16 %v620
        %v718 = vunpack.c.l.b16 %v621
        %v719 = vunpack.c.l.b16 %v622
        %v720 = vunpack.c.l.b16 %v623
        %v721 = vunpack.c.l.b16 %v624
        %v722 = vunpack.c.l.b16 %v625
        %v723 = vunpack.c.l.b16 %v626
        %v724 = vunpack.c.l.b16 %v627
        %v725 = vunpack.c.l.b16 %v628
        %v726 = vunpack.c.l.b16 %v629
        %v727 = vunpack.c.l.b16 %v630
        %v728 = vunpack.c.l.b16 %v631
        %v729 = vunpack.c.l.b16 %v632
        %v730 = vunpack.c.l.b16 %v633
        %v731 = vunpack.c.l.b16 %v634
        %v732 = vunpack.c.l.b16 %v635
        %v733 = vunpack.c.l.b16 %v636
        %v734 = vunpack.c.l.b16 %v637
        %v735 = vunpack.c.l.b16 %v638
        %v736 = vunpack.c.l.b16 %v639
        %v737 = vunpack.c.l.b16 %v640
        %v738 = vunpack.c.l.b16 %v641
        %v739 = vunpack.c.l.b16 %v642
        %v740 = vunpack.c.l.b16 %v643
        %v741 = vunpack.c.l.b16 %v644
        %v742 = vunpack.c.l.b16 %v645
        %v743 = vunpack.c.l.b16 %v646
        %v744 = vpack.c.b16 %v705, %v704
        %v745 = vpack.c.b16 %v707, %v706
        %v746 = vpack.c.b16 %v709, %v708
        %v747 = vpack.c.b16 %v711, %v710
        %v748 = vpack.c.b16 %v713, %v712
        %v749 = vpack.c.b16 %v715, %v714
        %v750 = vpack.c.b16 %v717, %v716
        %v751 = vpack.c.b16 %v719, %v718
        %v752 = vpack.c.b16 %v721, %v720
        %v753 = vpack.c.b16 %v723, %v722
        %v754 = vpack.c.b16 %v725, %v724
        %v755 = vpack.c.b16 %v727, %v726
        %v756 = vpack.c.b16 %v729, %v728
        %v757 = vpack.c.b16 %v731, %v730
        %v758 = vpack.c.b16 %v733, %v732
        %v759 = vpack.c.b16 %v735, %v734
        %v760 = vpack.c.b16 %v737, %v736
        %v761 = vpack.c.b16 %v739, %v738
        %v762 = vpack.c.b16 %v741, %v740
        %v763 = vpack.c.b16 %v743, %v742
        %vm784 = vcmask 523264
        %v786 = vsel %vm784, %v661, 0
        %788 = vmatprep.subr.bf16.mxu0 0
        %789 = vmatpush1.bf16.msra.mxu0 %v744
        %790 = vmatprep.subr.bf16.mxu0 0
        %791 = vmatpush1.bf16.msra.mxu0 %v745
        %792 = vmatprep.subr.bf16.mxu0 0
        %793 = vmatpush1.bf16.msra.mxu0 %v746
        %794 = vmatprep.subr.bf16.mxu0 0
        %795 = vmatpush1.bf16.msra.mxu0 %v747
        %796 = vmatprep.subr.bf16.mxu0 0
        %797 = vmatpush1.bf16.msra.mxu0 %v748
        %798 = vmatprep.subr.bf16.mxu0 0
        %799 = vmatpush1.bf16.msra.mxu0 %v749
        %800 = vmatprep.subr.bf16.mxu0 0
        %801 = vmatpush1.bf16.msra.mxu0 %v750
        %802 = vmatprep.subr.bf16.mxu0 0
        %803 = vmatpush1.bf16.msra.mxu0 %v751
        %804 = vmatprep.subr.bf16.mxu0 0
        %805 = vmatpush1.bf16.msra.mxu0 %v752
        %806 = vmatprep.subr.bf16.mxu0 0
        %807 = vmatpush1.bf16.msra.mxu0 %v753
        %808 = vmatprep.subr.bf16.mxu0 0
        %809 = vmatpush1.bf16.msra.mxu0 %v754
        %810 = vmatprep.subr.bf16.mxu0 0
        %811 = vmatpush1.bf16.msra.mxu0 %v755
        %812 = vmatprep.subr.bf16.mxu0 0
        %813 = vmatpush1.bf16.msra.mxu0 %v756
        %814 = vmatprep.subr.bf16.mxu0 0
        %815 = vmatpush1.bf16.msra.mxu0 %v757
        %816 = vmatprep.subr.bf16.mxu0 0
        %817 = vmatpush1.bf16.msra.mxu0 %v758
        %818 = vmatprep.subr.bf16.mxu0 0
        %819 = vmatpush1.bf16.msra.mxu0 %v759
        %820 = vmatprep.mubr.bf16.mxu0 %v660
        %821 = vmatmul.mubr.bf16.gmra.mrb[0].mxu0 %v659
        %v822 = vpop.f32.mrb[0].mxu0
        %v823 = vadd.f32 %v652, %v822
        %v824 = vpop.f32.mrb[0].mxu0
        %v825 = vpop.f32.mrb[0].mxu0
        %v826 = vpop.f32.mrb[0].mxu0
        %827 = vdwg.mxu0
        %828 = vmatprep.subr.bf16.mxu0 0
        %829 = vmatpush1.bf16.msra.mxu0 %v760
        %830 = vmatprep.subr.bf16.mxu0 0
        %831 = vmatpush1.bf16.msra.mxu0 %v761
        %832 = vmatprep.subr.bf16.mxu0 0
        %833 = vmatpush1.bf16.msra.mxu0 %v762
        %834 = vmatprep.subr.bf16.mxu0 0
        %835 = vmatpush1.bf16.msra.mxu0 %v763
        %836 = vmatprep.subr.bf16.mxu0 0
        %837 = vmatpush1.bf16.msra.mxu0 0
        %838 = vmatprep.subr.bf16.mxu0 0
        %839 = vmatpush1.bf16.msra.mxu0 0
        %840 = vmatprep.subr.bf16.mxu0 0
        %841 = vmatpush1.bf16.msra.mxu0 0
        %842 = vmatprep.subr.bf16.mxu0 0
        %843 = vmatpush1.bf16.msra.mxu0 0
        %844 = vmatprep.subr.bf16.mxu0 0
        %845 = vmatpush1.bf16.msra.mxu0 0
        %846 = vmatprep.subr.bf16.mxu0 0
        %847 = vmatpush1.bf16.msra.mxu0 0
        %848 = vmatprep.subr.bf16.mxu0 0
        %849 = vmatpush1.bf16.msra.mxu0 0
        %850 = vmatprep.subr.bf16.mxu0 0
        %851 = vmatpush1.bf16.msra.mxu0 0
        %852 = vmatprep.subr.bf16.mxu0 0
        %853 = vmatpush1.bf16.msra.mxu0 0
        %854 = vmatprep.subr.bf16.mxu0 0
        %855 = vmatpush1.bf16.msra.mxu0 0
        %856 = vmatprep.subr.bf16.mxu0 0
        %857 = vmatpush1.bf16.msra.mxu0 0
        %858 = vmatprep.subr.bf16.mxu0 0
        %859 = vmatpush1.bf16.msra.mxu0 0
        %860 = vmatprep.mubr.bf16.mxu0 0
        %861 = vmatmul.mubr.bf16.gmra.mrb[0].mxu0 %v786
        %v862 = vpop.f32.mrb[0].mxu0
        %v863 = vadd.f32 %v823, %v862
        %v864 = vpop.f32.mrb[0].mxu0
        %v865 = vpop.f32.mrb[0].mxu0
        %v866 = vpop.f32.mrb[0].mxu0
        %867 = vdwg.mxu0
        %v868 = vld [vmem:[%s593] sm:$0xf]
        %v869 = vld [vmem:[%s6] sm:$0xf]
        %v870 = vld [vmem:[%s6 + $0x4] sm:$0xf]
        %v871 = vld [vmem:[%s6 + $0x8] sm:$0xf]
        %v872 = vld [vmem:[%s6 + $0xc] sm:$0xf]
        %v873 = vld [vmem:[%s6 + $0x10] sm:$0xf]
        %v874 = vld [vmem:[%s6 + $0x14] sm:$0xf]
        %v875 = vld [vmem:[%s6 + $0x18] sm:$0xf]
        %v876 = vld [vmem:[%s6 + $0x1c] sm:$0xf]
        %v877 = vld [vmem:[%s7] sm:$0x1]
        %v879 = vlaneseq
        %v880 = vshrl.u32 %v879, 7
        %v881 = vsub.s32 0, %v880
        %v882 = vrot.slane %v877, %v881
        %v892 = vunpack.c.l.b16 %v869
        %v893 = vunpack.c.l.b16 %v870
        %v894 = vunpack.c.l.b16 %v871
        %v895 = vunpack.c.l.b16 %v872
        %v896 = vunpack.c.l.b16 %v873
        %v897 = vunpack.c.l.b16 %v874
        %v898 = vunpack.c.l.b16 %v875
        %v899 = vunpack.c.l.b16 %v876
        %v900 = vpack.c.b16 %v893, %v892
        %v901 = vpack.c.b16 %v895, %v894
        %v902 = vpack.c.b16 %v897, %v896
        %v903 = vpack.c.b16 %v899, %v898
        %v909 = vsel %vm784, %v868, 0
        %911 = vmatprep.subr.bf16.mxu0 0
        %912 = vmatpush1.bf16.msra.mxu0 %v900
        %913 = vmatprep.subr.bf16.mxu0 0
        %914 = vmatpush1.bf16.msra.mxu0 %v901
        %915 = vmatprep.subr.bf16.mxu0 0
        %916 = vmatpush1.bf16.msra.mxu0 %v902
        %917 = vmatprep.subr.bf16.mxu0 0
        %918 = vmatpush1.bf16.msra.mxu0 %v903
        %919 = vmatprep.subr.bf16.mxu0 0
        %920 = vmatpush1.bf16.msra.mxu0 0
        %921 = vmatprep.subr.bf16.mxu0 0
        %922 = vmatpush1.bf16.msra.mxu0 0
        %923 = vmatprep.subr.bf16.mxu0 0
        %924 = vmatpush1.bf16.msra.mxu0 0
        %925 = vmatprep.subr.bf16.mxu0 0
        %926 = vmatpush1.bf16.msra.mxu0 0
        %927 = vmatprep.subr.bf16.mxu0 0
        %928 = vmatpush1.bf16.msra.mxu0 0
        %929 = vmatprep.subr.bf16.mxu0 0
        %930 = vmatpush1.bf16.msra.mxu0 0
        %931 = vmatprep.subr.bf16.mxu0 0
        %932 = vmatpush1.bf16.msra.mxu0 0
        %933 = vmatprep.subr.bf16.mxu0 0
        %934 = vmatpush1.bf16.msra.mxu0 0
        %935 = vmatprep.subr.bf16.mxu0 0
        %936 = vmatpush1.bf16.msra.mxu0 0
        %937 = vmatprep.subr.bf16.mxu0 0
        %938 = vmatpush1.bf16.msra.mxu0 0
        %939 = vmatprep.subr.bf16.mxu0 0
        %940 = vmatpush1.bf16.msra.mxu0 0
        %941 = vmatprep.subr.bf16.mxu0 0
        %942 = vmatpush1.bf16.msra.mxu0 0
        %943 = vmatprep.mubr.bf16.mxu0 0
        %944 = vmatmul.mubr.bf16.gmra.mrb[0].mxu0 %v909
        %v945 = vpop.f32.mrb[0].mxu0
        %v946 = vadd.f32 %v882, %v945
        %v947 = vpop.f32.mrb[0].mxu0
        %v948 = vpop.f32.mrb[0].mxu0
        %v949 = vpop.f32.mrb[0].mxu0
        %950 = vdwg.mxu0
        %v951 = vld [vmem:[%s598] sm:$0xff]
        %v952 = vld [vmem:[%s598 + $0x8] sm:$0xff]
        %v953 = vld [vmem:[%s598 + $0x10] sm:$0xf]
        %v954 = vld [vmem:[%s8] sm:$0xf]
        %v955 = vld [vmem:[%s8 + $0x4] sm:$0xf]
        %v956 = vld [vmem:[%s8 + $0x8] sm:$0xf]
        %v957 = vld [vmem:[%s8 + $0xc] sm:$0xf]
        %v958 = vld [vmem:[%s8 + $0x10] sm:$0xf]
        %v959 = vld [vmem:[%s8 + $0x14] sm:$0xf]
        %v960 = vld [vmem:[%s8 + $0x18] sm:$0xf]
        %v961 = vld [vmem:[%s8 + $0x1c] sm:$0xf]
        %v962 = vld [vmem:[%s8 + $0x20] sm:$0xf]
        %v963 = vld [vmem:[%s8 + $0x24] sm:$0xf]
        %v964 = vld [vmem:[%s8 + $0x28] sm:$0xf]
        %v965 = vld [vmem:[%s8 + $0x2c] sm:$0xf]
        %v966 = vld [vmem:[%s8 + $0x30] sm:$0xf]
        %v967 = vld [vmem:[%s8 + $0x34] sm:$0xf]
        %v968 = vld [vmem:[%s8 + $0x38] sm:$0xf]
        %v969 = vld [vmem:[%s8 + $0x3c] sm:$0xf]
        %v970 = vld [vmem:[%s8 + $0x40] sm:$0xf]
        %v971 = vld [vmem:[%s8 + $0x44] sm:$0xf]
        %v972 = vld [vmem:[%s8 + $0x48] sm:$0xf]
        %v973 = vld [vmem:[%s8 + $0x4c] sm:$0xf]
        %v974 = vld [vmem:[%s8 + $0x50] sm:$0xf]
        %v975 = vld [vmem:[%s8 + $0x54] sm:$0xf]
        %v976 = vld [vmem:[%s8 + $0x58] sm:$0xf]
        %v977 = vld [vmem:[%s8 + $0x5c] sm:$0xf]
        %v978 = vld [vmem:[%s8 + $0x60] sm:$0xf]
        %v979 = vld [vmem:[%s8 + $0x64] sm:$0xf]
        %v980 = vld [vmem:[%s8 + $0x68] sm:$0xf]
        %v981 = vld [vmem:[%s8 + $0x6c] sm:$0xf]
        %v982 = vld [vmem:[%s8 + $0x70] sm:$0xf]
        %v983 = vld [vmem:[%s8 + $0x74] sm:$0xf]
        %v984 = vld [vmem:[%s8 + $0x78] sm:$0xf]
        %v985 = vld [vmem:[%s8 + $0x7c] sm:$0xf]
        %v986 = vld [vmem:[%s8 + $0x80] sm:$0xf]
        %v987 = vld [vmem:[%s8 + $0x84] sm:$0xf]
        %v988 = vld [vmem:[%s8 + $0x88] sm:$0xf]
        %v989 = vld [vmem:[%s8 + $0x8c] sm:$0xf]
        %v990 = vld [vmem:[%s8 + $0x90] sm:$0xf]
        %v991 = vld [vmem:[%s8 + $0x94] sm:$0xf]
        %v992 = vld [vmem:[%s8 + $0x98] sm:$0xf]
        %v993 = vld [vmem:[%s8 + $0x9c] sm:$0xf]
        %v994 = vld [vmem:[%s8 + $0xa0] sm:$0xf]
        %v995 = vld [vmem:[%s8 + $0xa4] sm:$0xf]
        %v996 = vld [vmem:[%s8 + $0xa8] sm:$0xf]
        %v997 = vld [vmem:[%s8 + $0xac] sm:$0xf]
        %v998 = vld [vmem:[%s8 + $0xb0] sm:$0xf]
        %v999 = vld [vmem:[%s8 + $0xb4] sm:$0xf]
        %v1000 = vld [vmem:[%s8 + $0xb8] sm:$0xf]
        %v1001 = vld [vmem:[%s8 + $0xbc] sm:$0xf]
        %v1002 = vld [vmem:[%s8 + $0xc0] sm:$0xf]
        %v1003 = vld [vmem:[%s8 + $0xc4] sm:$0xf]
        %v1004 = vld [vmem:[%s8 + $0xc8] sm:$0xf]
        %v1005 = vld [vmem:[%s8 + $0xcc] sm:$0xf]
        %v1006 = vld [vmem:[%s8 + $0xd0] sm:$0xf]
        %v1007 = vld [vmem:[%s8 + $0xd4] sm:$0xf]
        %v1008 = vld [vmem:[%s8 + $0xd8] sm:$0xf]
        %v1009 = vld [vmem:[%s8 + $0xdc] sm:$0xf]
        %v1010 = vld [vmem:[%s8 + $0xe0] sm:$0xf]
        %v1011 = vld [vmem:[%s8 + $0xe4] sm:$0xf]
        %v1012 = vld [vmem:[%s8 + $0xe8] sm:$0xf]
        %v1013 = vld [vmem:[%s8 + $0xec] sm:$0xf]
        %v1014 = vld [vmem:[%s8 + $0xf0] sm:$0xf]
        %v1015 = vld [vmem:[%s8 + $0xf4] sm:$0xf]
        %v1016 = vld [vmem:[%s8 + $0xf8] sm:$0xf]
        %v1017 = vld [vmem:[%s8 + $0xfc] sm:$0xf]
        %v1018 = vld [vmem:[%s8 + $0x100] sm:$0xf]
        %v1019 = vld [vmem:[%s8 + $0x104] sm:$0xf]
        %v1020 = vld [vmem:[%s8 + $0x108] sm:$0xf]
        %v1021 = vld [vmem:[%s8 + $0x10c] sm:$0xf]
        %v1022 = vld [vmem:[%s8 + $0x110] sm:$0xf]
        %v1023 = vld [vmem:[%s8 + $0x114] sm:$0xf]
        %v1024 = vld [vmem:[%s8 + $0x118] sm:$0xf]
        %v1025 = vld [vmem:[%s8 + $0x11c] sm:$0xf]
        %v1026 = vld [vmem:[%s8 + $0x120] sm:$0xf]
        %v1027 = vld [vmem:[%s8 + $0x124] sm:$0xf]
        %v1028 = vld [vmem:[%s8 + $0x128] sm:$0xf]
        %v1029 = vld [vmem:[%s8 + $0x12c] sm:$0xf]
        %v1030 = vld [vmem:[%s8 + $0x130] sm:$0xf]
        %v1031 = vld [vmem:[%s8 + $0x134] sm:$0xf]
        %v1032 = vld [vmem:[%s8 + $0x138] sm:$0xf]
        %v1033 = vld [vmem:[%s8 + $0x13c] sm:$0xf]
        %v1034 = vld [vmem:[%s9] sm:$0x1]
        %v1036 = vlaneseq
        %v1037 = vshrl.u32 %v1036, 7
        %v1038 = vsub.s32 0, %v1037
        %v1039 = vrot.slane %v1034, %v1038
        %v1044 = vunpack.c.l.b16 %v951
        %v1045 = vunpack.c.h.b16 %v951
        %v1046 = vunpack.c.l.b16 %v952
        %v1047 = vunpack.c.h.b16 %v952
        %v1048 = vunpack.c.l.b16 %v953
        %v1049 = vpack.c.b16 %v1044, %v1044
        %v1050 = vpack.c.b16 %v1045, %v1045
        %v1051 = vpack.c.b16 %v1046, %v1046
        %v1052 = vpack.c.b16 %v1047, %v1047
        %v1053 = vpack.c.b16 %v1048, %v1048
        %v1139 = vunpack.c.l.b16 %v954
        %v1140 = vunpack.c.l.b16 %v955
        %v1141 = vunpack.c.l.b16 %v956
        %v1142 = vunpack.c.l.b16 %v957
        %v1143 = vunpack.c.l.b16 %v958
        %v1144 = vunpack.c.l.b16 %v959
        %v1145 = vunpack.c.l.b16 %v960
        %v1146 = vunpack.c.l.b16 %v961
        %v1147 = vunpack.c.l.b16 %v962
        %v1148 = vunpack.c.l.b16 %v963
        %v1149 = vunpack.c.l.b16 %v964
        %v1150 = vunpack.c.l.b16 %v965
        %v1151 = vunpack.c.l.b16 %v966
        %v1152 = vunpack.c.l.b16 %v967
        %v1153 = vunpack.c.l.b16 %v968
        %v1154 = vunpack.c.l.b16 %v969
        %v1155 = vunpack.c.l.b16 %v970
        %v1156 = vunpack.c.l.b16 %v971
        %v1157 = vunpack.c.l.b16 %v972
        %v1158 = vunpack.c.l.b16 %v973
        %v1159 = vunpack.c.l.b16 %v974
        %v1160 = vunpack.c.l.b16 %v975
        %v1161 = vunpack.c.l.b16 %v976
        %v1162 = vunpack.c.l.b16 %v977
        %v1163 = vunpack.c.l.b16 %v978
        %v1164 = vunpack.c.l.b16 %v979
        %v1165 = vunpack.c.l.b16 %v980
        %v1166 = vunpack.c.l.b16 %v981
        %v1167 = vunpack.c.l.b16 %v982
        %v1168 = vunpack.c.l.b16 %v983
        %v1169 = vunpack.c.l.b16 %v984
        %v1170 = vunpack.c.l.b16 %v985
        %v1171 = vunpack.c.l.b16 %v986
        %v1172 = vunpack.c.l.b16 %v987
        %v1173 = vunpack.c.l.b16 %v988
        %v1174 = vunpack.c.l.b16 %v989
        %v1175 = vunpack.c.l.b16 %v990
        %v1176 = vunpack.c.l.b16 %v991
        %v1177 = vunpack.c.l.b16 %v992
        %v1178 = vunpack.c.l.b16 %v993
        %v1179 = vunpack.c.l.b16 %v994
        %v1180 = vunpack.c.l.b16 %v995
        %v1181 = vunpack.c.l.b16 %v996
        %v1182 = vunpack.c.l.b16 %v997
        %v1183 = vunpack.c.l.b16 %v998
        %v1184 = vunpack.c.l.b16 %v999
        %v1185 = vunpack.c.l.b16 %v1000
        %v1186 = vunpack.c.l.b16 %v1001
        %v1187 = vunpack.c.l.b16 %v1002
        %v1188 = vunpack.c.l.b16 %v1003
        %v1189 = vunpack.c.l.b16 %v1004
        %v1190 = vunpack.c.l.b16 %v1005
        %v1191 = vunpack.c.l.b16 %v1006
        %v1192 = vunpack.c.l.b16 %v1007
        %v1193 = vunpack.c.l.b16 %v1008
        %v1194 = vunpack.c.l.b16 %v1009
        %v1195 = vunpack.c.l.b16 %v1010
        %v1196 = vunpack.c.l.b16 %v1011
        %v1197 = vunpack.c.l.b16 %v1012
        %v1198 = vunpack.c.l.b16 %v1013
        %v1199 = vunpack.c.l.b16 %v1014
        %v1200 = vunpack.c.l.b16 %v1015
        %v1201 = vunpack.c.l.b16 %v1016
        %v1202 = vunpack.c.l.b16 %v1017
        %v1203 = vunpack.c.l.b16 %v1018
        %v1204 = vunpack.c.l.b16 %v1019
        %v1205 = vunpack.c.l.b16 %v1020
        %v1206 = vunpack.c.l.b16 %v1021
        %v1207 = vunpack.c.l.b16 %v1022
        %v1208 = vunpack.c.l.b16 %v1023
        %v1209 = vunpack.c.l.b16 %v1024
        %v1210 = vunpack.c.l.b16 %v1025
        %v1211 = vunpack.c.l.b16 %v1026
        %v1212 = vunpack.c.l.b16 %v1027
        %v1213 = vunpack.c.l.b16 %v1028
        %v1214 = vunpack.c.l.b16 %v1029
        %v1215 = vunpack.c.l.b16 %v1030
        %v1216 = vunpack.c.l.b16 %v1031
        %v1217 = vunpack.c.l.b16 %v1032
        %v1218 = vunpack.c.l.b16 %v1033
        %v1219 = vpack.c.b16 %v1140, %v1139
        %v1220 = vpack.c.b16 %v1142, %v1141
        %v1221 = vpack.c.b16 %v1144, %v1143
        %v1222 = vpack.c.b16 %v1146, %v1145
        %v1223 = vpack.c.b16 %v1148, %v1147
        %v1224 = vpack.c.b16 %v1150, %v1149
        %v1225 = vpack.c.b16 %v1152, %v1151
        %v1226 = vpack.c.b16 %v1154, %v1153
        %v1227 = vpack.c.b16 %v1156, %v1155
        %v1228 = vpack.c.b16 %v1158, %v1157
        %v1229 = vpack.c.b16 %v1160, %v1159
        %v1230 = vpack.c.b16 %v1162, %v1161
        %v1231 = vpack.c.b16 %v1164, %v1163
        %v1232 = vpack.c.b16 %v1166, %v1165
        %v1233 = vpack.c.b16 %v1168, %v1167
        %v1234 = vpack.c.b16 %v1170, %v1169
        %v1235 = vpack.c.b16 %v1172, %v1171
        %v1236 = vpack.c.b16 %v1174, %v1173
        %v1237 = vpack.c.b16 %v1176, %v1175
        %v1238 = vpack.c.b16 %v1178, %v1177
        %v1239 = vpack.c.b16 %v1180, %v1179
        %v1240 = vpack.c.b16 %v1182, %v1181
        %v1241 = vpack.c.b16 %v1184, %v1183
        %v1242 = vpack.c.b16 %v1186, %v1185
        %v1243 = vpack.c.b16 %v1188, %v1187
        %v1244 = vpack.c.b16 %v1190, %v1189
        %v1245 = vpack.c.b16 %v1192, %v1191
        %v1246 = vpack.c.b16 %v1194, %v1193
        %v1247 = vpack.c.b16 %v1196, %v1195
        %v1248 = vpack.c.b16 %v1198, %v1197
        %v1249 = vpack.c.b16 %v1200, %v1199
        %v1250 = vpack.c.b16 %v1202, %v1201
        %v1251 = vpack.c.b16 %v1204, %v1203
        %v1252 = vpack.c.b16 %v1206, %v1205
        %v1253 = vpack.c.b16 %v1208, %v1207
        %v1254 = vpack.c.b16 %v1210, %v1209
        %v1255 = vpack.c.b16 %v1212, %v1211
        %v1256 = vpack.c.b16 %v1214, %v1213
        %v1257 = vpack.c.b16 %v1216, %v1215
        %v1258 = vpack.c.b16 %v1218, %v1217
        %1299 = vmatprep.subr.bf16.mxu0 0
        %1300 = vmatpush1.bf16.msra.mxu0 %v1219
        %1301 = vmatprep.subr.bf16.mxu0 0
        %1302 = vmatpush1.bf16.msra.mxu0 %v1220
        %1303 = vmatprep.subr.bf16.mxu0 0
        %1304 = vmatpush1.bf16.msra.mxu0 %v1221
        %1305 = vmatprep.subr.bf16.mxu0 0
        %1306 = vmatpush1.bf16.msra.mxu0 %v1222
        %1307 = vmatprep.subr.bf16.mxu0 0
        %1308 = vmatpush1.bf16.msra.mxu0 %v1223
        %1309 = vmatprep.subr.bf16.mxu0 0
        %1310 = vmatpush1.bf16.msra.mxu0 %v1224
        %1311 = vmatprep.subr.bf16.mxu0 0
        %1312 = vmatpush1.bf16.msra.mxu0 %v1225
        %1313 = vmatprep.subr.bf16.mxu0 0
        %1314 = vmatpush1.bf16.msra.mxu0 %v1226
        %1315 = vmatprep.subr.bf16.mxu0 0
        %1316 = vmatpush1.bf16.msra.mxu0 %v1227
        %1317 = vmatprep.subr.bf16.mxu0 0
        %1318 = vmatpush1.bf16.msra.mxu0 %v1228
        %1319 = vmatprep.subr.bf16.mxu0 0
        %1320 = vmatpush1.bf16.msra.mxu0 %v1229
        %1321 = vmatprep.subr.bf16.mxu0 0
        %1322 = vmatpush1.bf16.msra.mxu0 %v1230
        %1323 = vmatprep.subr.bf16.mxu0 0
        %1324 = vmatpush1.bf16.msra.mxu0 %v1231
        %1325 = vmatprep.subr.bf16.mxu0 0
        %1326 = vmatpush1.bf16.msra.mxu0 %v1232
        %1327 = vmatprep.subr.bf16.mxu0 0
        %1328 = vmatpush1.bf16.msra.mxu0 %v1233
        %1329 = vmatprep.subr.bf16.mxu0 0
        %1330 = vmatpush1.bf16.msra.mxu0 %v1234
        %1331 = vmatprep.mubr.bf16.mxu0 %v1050
        %1332 = vmatmul.mubr.bf16.gmra.mrb[0].mxu0 %v1049
        %v1333 = vpop.f32.mrb[0].mxu0
        %v1334 = vadd.f32 %v1039, %v1333
        %v1335 = vpop.f32.mrb[0].mxu0
        %v1336 = vpop.f32.mrb[0].mxu0
        %v1337 = vpop.f32.mrb[0].mxu0
        %1338 = vdwg.mxu0
        %1339 = vmatprep.subr.bf16.mxu0 0
        %1340 = vmatpush1.bf16.msra.mxu0 %v1235
        %1341 = vmatprep.subr.bf16.mxu0 0
        %1342 = vmatpush1.bf16.msra.mxu0 %v1236
        %1343 = vmatprep.subr.bf16.mxu0 0
        %1344 = vmatpush1.bf16.msra.mxu0 %v1237
        %1345 = vmatprep.subr.bf16.mxu0 0
        %1346 = vmatpush1.bf16.msra.mxu0 %v1238
        %1347 = vmatprep.subr.bf16.mxu0 0
        %1348 = vmatpush1.bf16.msra.mxu0 %v1239
        %1349 = vmatprep.subr.bf16.mxu0 0
        %1350 = vmatpush1.bf16.msra.mxu0 %v1240
        %1351 = vmatprep.subr.bf16.mxu0 0
        %1352 = vmatpush1.bf16.msra.mxu0 %v1241
        %1353 = vmatprep.subr.bf16.mxu0 0
        %1354 = vmatpush1.bf16.msra.mxu0 %v1242
        %1355 = vmatprep.subr.bf16.mxu0 0
        %1356 = vmatpush1.bf16.msra.mxu0 %v1243
        %1357 = vmatprep.subr.bf16.mxu0 0
        %1358 = vmatpush1.bf16.msra.mxu0 %v1244
        %1359 = vmatprep.subr.bf16.mxu0 0
        %1360 = vmatpush1.bf16.msra.mxu0 %v1245
        %1361 = vmatprep.subr.bf16.mxu0 0
        %1362 = vmatpush1.bf16.msra.mxu0 %v1246
        %1363 = vmatprep.subr.bf16.mxu0 0
        %1364 = vmatpush1.bf16.msra.mxu0 %v1247
        %1365 = vmatprep.subr.bf16.mxu0 0
        %1366 = vmatpush1.bf16.msra.mxu0 %v1248
        %1367 = vmatprep.subr.bf16.mxu0 0
        %1368 = vmatpush1.bf16.msra.mxu0 %v1249
        %1369 = vmatprep.subr.bf16.mxu0 0
        %1370 = vmatpush1.bf16.msra.mxu0 %v1250
        %1371 = vmatprep.mubr.bf16.mxu0 %v1052
        %1372 = vmatmul.mubr.bf16.gmra.mrb[0].mxu0 %v1051
        %v1373 = vpop.f32.mrb[0].mxu0
        %v1374 = vadd.f32 %v1334, %v1373
        %v1375 = vpop.f32.mrb[0].mxu0
        %v1376 = vpop.f32.mrb[0].mxu0
        %v1377 = vpop.f32.mrb[0].mxu0
        %1378 = vdwg.mxu0
        %1379 = vmatprep.subr.bf16.mxu0 0
        %1380 = vmatpush1.bf16.msra.mxu0 %v1251
        %1381 = vmatprep.subr.bf16.mxu0 0
        %1382 = vmatpush1.bf16.msra.mxu0 %v1252
        %1383 = vmatprep.subr.bf16.mxu0 0
        %1384 = vmatpush1.bf16.msra.mxu0 %v1253
        %1385 = vmatprep.subr.bf16.mxu0 0
        %1386 = vmatpush1.bf16.msra.mxu0 %v1254
        %1387 = vmatprep.subr.bf16.mxu0 0
        %1388 = vmatpush1.bf16.msra.mxu0 %v1255
        %1389 = vmatprep.subr.bf16.mxu0 0
        %1390 = vmatpush1.bf16.msra.mxu0 %v1256
        %1391 = vmatprep.subr.bf16.mxu0 0
        %1392 = vmatpush1.bf16.msra.mxu0 %v1257
        %1393 = vmatprep.subr.bf16.mxu0 0
        %1394 = vmatpush1.bf16.msra.mxu0 %v1258
        %1395 = vmatprep.subr.bf16.mxu0 0
        %1396 = vmatpush1.bf16.msra.mxu0 0
        %1397 = vmatprep.subr.bf16.mxu0 0
        %1398 = vmatpush1.bf16.msra.mxu0 0
        %1399 = vmatprep.subr.bf16.mxu0 0
        %1400 = vmatpush1.bf16.msra.mxu0 0
        %1401 = vmatprep.subr.bf16.mxu0 0
        %1402 = vmatpush1.bf16.msra.mxu0 0
        %1403 = vmatprep.subr.bf16.mxu0 0
        %1404 = vmatpush1.bf16.msra.mxu0 0
        %1405 = vmatprep.subr.bf16.mxu0 0
        %1406 = vmatpush1.bf16.msra.mxu0 0
        %1407 = vmatprep.subr.bf16.mxu0 0
        %1408 = vmatpush1.bf16.msra.mxu0 0
        %1409 = vmatprep.subr.bf16.mxu0 0
        %1410 = vmatpush1.bf16.msra.mxu0 0
        %1411 = vmatprep.mubr.bf16.mxu0 0
        %1412 = vmatmul.mubr.bf16.gmra.mrb[0].mxu0 %v1053
        %v1413 = vpop.f32.mrb[0].mxu0
        %v1414 = vadd.f32 %v1374, %v1413
        %v1415 = vpop.f32.mrb[0].mxu0
        %v1416 = vpop.f32.mrb[0].mxu0
        %v1417 = vpop.f32.mrb[0].mxu0
        %1418 = vdwg.mxu0
        %v1419 = vld [vmem:[%s603] sm:$0xff]
        %v1420 = vld [vmem:[%s603 + $0x8] sm:$0xff]
        %v1421 = vld [vmem:[%s603 + $0x10] sm:$0xff]
        %v1422 = vld [vmem:[%s603 + $0x18] sm:$0xff]
        %v1423 = vld [vmem:[%s10] sm:$0xf]
        %v1424 = vld [vmem:[%s10 + $0x4] sm:$0xf]
        %v1425 = vld [vmem:[%s10 + $0x8] sm:$0xf]
        %v1426 = vld [vmem:[%s10 + $0xc] sm:$0xf]
        %v1427 = vld [vmem:[%s10 + $0x10] sm:$0xf]
        %v1428 = vld [vmem:[%s10 + $0x14] sm:$0xf]
        %v1429 = vld [vmem:[%s10 + $0x18] sm:$0xf]
        %v1430 = vld [vmem:[%s10 + $0x1c] sm:$0xf]
        %v1431 = vld [vmem:[%s10 + $0x20] sm:$0xf]
        %v1432 = vld [vmem:[%s10 + $0x24] sm:$0xf]
        %v1433 = vld [vmem:[%s10 + $0x28] sm:$0xf]
        %v1434 = vld [vmem:[%s10 + $0x2c] sm:$0xf]
        %v1435 = vld [vmem:[%s10 + $0x30] sm:$0xf]
        %v1436 = vld [vmem:[%s10 + $0x34] sm:$0xf]
        %v1437 = vld [vmem:[%s10 + $0x38] sm:$0xf]
        %v1438 = vld [vmem:[%s10 + $0x3c] sm:$0xf]
        %v1439 = vld [vmem:[%s10 + $0x40] sm:$0xf]
        %v1440 = vld [vmem:[%s10 + $0x44] sm:$0xf]
        %v1441 = vld [vmem:[%s10 + $0x48] sm:$0xf]
        %v1442 = vld [vmem:[%s10 + $0x4c] sm:$0xf]
        %v1443 = vld [vmem:[%s10 + $0x50] sm:$0xf]
        %v1444 = vld [vmem:[%s10 + $0x54] sm:$0xf]
        %v1445 = vld [vmem:[%s10 + $0x58] sm:$0xf]
        %v1446 = vld [vmem:[%s10 + $0x5c] sm:$0xf]
        %v1447 = vld [vmem:[%s10 + $0x60] sm:$0xf]
        %v1448 = vld [vmem:[%s10 + $0x64] sm:$0xf]
        %v1449 = vld [vmem:[%s10 + $0x68] sm:$0xf]
        %v1450 = vld [vmem:[%s10 + $0x6c] sm:$0xf]
        %v1451 = vld [vmem:[%s10 + $0x70] sm:$0xf]
        %v1452 = vld [vmem:[%s10 + $0x74] sm:$0xf]
        %v1453 = vld [vmem:[%s10 + $0x78] sm:$0xf]
        %v1454 = vld [vmem:[%s10 + $0x7c] sm:$0xf]
        %v1455 = vld [vmem:[%s10 + $0x80] sm:$0xf]
        %v1456 = vld [vmem:[%s10 + $0x84] sm:$0xf]
        %v1457 = vld [vmem:[%s10 + $0x88] sm:$0xf]
        %v1458 = vld [vmem:[%s10 + $0x8c] sm:$0xf]
        %v1459 = vld [vmem:[%s10 + $0x90] sm:$0xf]
        %v1460 = vld [vmem:[%s10 + $0x94] sm:$0xf]
        %v1461 = vld [vmem:[%s10 + $0x98] sm:$0xf]
        %v1462 = vld [vmem:[%s10 + $0x9c] sm:$0xf]
        %v1463 = vld [vmem:[%s10 + $0xa0] sm:$0xf]
        %v1464 = vld [vmem:[%s10 + $0xa4] sm:$0xf]
        %v1465 = vld [vmem:[%s10 + $0xa8] sm:$0xf]
        %v1466 = vld [vmem:[%s10 + $0xac] sm:$0xf]
        %v1467 = vld [vmem:[%s10 + $0xb0] sm:$0xf]
        %v1468 = vld [vmem:[%s10 + $0xb4] sm:$0xf]
        %v1469 = vld [vmem:[%s10 + $0xb8] sm:$0xf]
        %v1470 = vld [vmem:[%s10 + $0xbc] sm:$0xf]
        %v1471 = vld [vmem:[%s10 + $0xc0] sm:$0xf]
        %v1472 = vld [vmem:[%s10 + $0xc4] sm:$0xf]
        %v1473 = vld [vmem:[%s10 + $0xc8] sm:$0xf]
        %v1474 = vld [vmem:[%s10 + $0xcc] sm:$0xf]
        %v1475 = vld [vmem:[%s10 + $0xd0] sm:$0xf]
        %v1476 = vld [vmem:[%s10 + $0xd4] sm:$0xf]
        %v1477 = vld [vmem:[%s10 + $0xd8] sm:$0xf]
        %v1478 = vld [vmem:[%s10 + $0xdc] sm:$0xf]
        %v1479 = vld [vmem:[%s10 + $0xe0] sm:$0xf]
        %v1480 = vld [vmem:[%s10 + $0xe4] sm:$0xf]
        %v1481 = vld [vmem:[%s10 + $0xe8] sm:$0xf]
        %v1482 = vld [vmem:[%s10 + $0xec] sm:$0xf]
        %v1483 = vld [vmem:[%s10 + $0xf0] sm:$0xf]
        %v1484 = vld [vmem:[%s10 + $0xf4] sm:$0xf]
        %v1485 = vld [vmem:[%s10 + $0xf8] sm:$0xf]
        %v1486 = vld [vmem:[%s10 + $0xfc] sm:$0xf]
        %v1487 = vld [vmem:[%s10 + $0x100] sm:$0xf]
        %v1488 = vld [vmem:[%s10 + $0x104] sm:$0xf]
        %v1489 = vld [vmem:[%s10 + $0x108] sm:$0xf]
        %v1490 = vld [vmem:[%s10 + $0x10c] sm:$0xf]
        %v1491 = vld [vmem:[%s10 + $0x110] sm:$0xf]
        %v1492 = vld [vmem:[%s10 + $0x114] sm:$0xf]
        %v1493 = vld [vmem:[%s10 + $0x118] sm:$0xf]
        %v1494 = vld [vmem:[%s10 + $0x11c] sm:$0xf]
        %v1495 = vld [vmem:[%s10 + $0x120] sm:$0xf]
        %v1496 = vld [vmem:[%s10 + $0x124] sm:$0xf]
        %v1497 = vld [vmem:[%s10 + $0x128] sm:$0xf]
        %v1498 = vld [vmem:[%s10 + $0x12c] sm:$0xf]
        %v1499 = vld [vmem:[%s10 + $0x130] sm:$0xf]
        %v1500 = vld [vmem:[%s10 + $0x134] sm:$0xf]
        %v1501 = vld [vmem:[%s10 + $0x138] sm:$0xf]
        %v1502 = vld [vmem:[%s10 + $0x13c] sm:$0xf]
        %v1503 = vld [vmem:[%s10 + $0x140] sm:$0xf]
        %v1504 = vld [vmem:[%s10 + $0x144] sm:$0xf]
        %v1505 = vld [vmem:[%s10 + $0x148] sm:$0xf]
        %v1506 = vld [vmem:[%s10 + $0x14c] sm:$0xf]
        %v1507 = vld [vmem:[%s10 + $0x150] sm:$0xf]
        %v1508 = vld [vmem:[%s10 + $0x154] sm:$0xf]
        %v1509 = vld [vmem:[%s10 + $0x158] sm:$0xf]
        %v1510 = vld [vmem:[%s10 + $0x15c] sm:$0xf]
        %v1511 = vld [vmem:[%s10 + $0x160] sm:$0xf]
        %v1512 = vld [vmem:[%s10 + $0x164] sm:$0xf]
        %v1513 = vld [vmem:[%s10 + $0x168] sm:$0xf]
        %v1514 = vld [vmem:[%s10 + $0x16c] sm:$0xf]
        %v1515 = vld [vmem:[%s10 + $0x170] sm:$0xf]
        %v1516 = vld [vmem:[%s10 + $0x174] sm:$0xf]
        %v1517 = vld [vmem:[%s10 + $0x178] sm:$0xf]
        %v1518 = vld [vmem:[%s10 + $0x17c] sm:$0xf]
        %v1519 = vld [vmem:[%s10 + $0x180] sm:$0xf]
        %v1520 = vld [vmem:[%s10 + $0x184] sm:$0xf]
        %v1521 = vld [vmem:[%s10 + $0x188] sm:$0xf]
        %v1522 = vld [vmem:[%s10 + $0x18c] sm:$0xf]
        %v1523 = vld [vmem:[%s10 + $0x190] sm:$0xf]
        %v1524 = vld [vmem:[%s10 + $0x194] sm:$0xf]
        %v1525 = vld [vmem:[%s10 + $0x198] sm:$0xf]
        %v1526 = vld [vmem:[%s10 + $0x19c] sm:$0xf]
        %v1527 = vld [vmem:[%s10 + $0x1a0] sm:$0xf]
        %v1528 = vld [vmem:[%s10 + $0x1a4] sm:$0xf]
        %v1529 = vld [vmem:[%s10 + $0x1a8] sm:$0xf]
        %v1530 = vld [vmem:[%s10 + $0x1ac] sm:$0xf]
        %v1531 = vld [vmem:[%s10 + $0x1b0] sm:$0xf]
        %v1532 = vld [vmem:[%s10 + $0x1b4] sm:$0xf]
        %v1533 = vld [vmem:[%s10 + $0x1b8] sm:$0xf]
        %v1534 = vld [vmem:[%s10 + $0x1bc] sm:$0xf]
        %v1535 = vld [vmem:[%s10 + $0x1c0] sm:$0xf]
        %v1536 = vld [vmem:[%s10 + $0x1c4] sm:$0xf]
        %v1537 = vld [vmem:[%s10 + $0x1c8] sm:$0xf]
        %v1538 = vld [vmem:[%s10 + $0x1cc] sm:$0xf]
        %v1539 = vld [vmem:[%s10 + $0x1d0] sm:$0xf]
        %v1540 = vld [vmem:[%s10 + $0x1d4] sm:$0xf]
        %v1541 = vld [vmem:[%s10 + $0x1d8] sm:$0xf]
        %v1542 = vld [vmem:[%s10 + $0x1dc] sm:$0xf]
        %v1543 = vld [vmem:[%s10 + $0x1e0] sm:$0xf]
        %v1544 = vld [vmem:[%s10 + $0x1e4] sm:$0xf]
        %v1545 = vld [vmem:[%s10 + $0x1e8] sm:$0xf]
        %v1546 = vld [vmem:[%s10 + $0x1ec] sm:$0xf]
        %v1547 = vld [vmem:[%s10 + $0x1f0] sm:$0xf]
        %v1548 = vld [vmem:[%s10 + $0x1f4] sm:$0xf]
        %v1549 = vld [vmem:[%s10 + $0x1f8] sm:$0xf]
        %v1550 = vld [vmem:[%s10 + $0x1fc] sm:$0xf]
        %v1551 = vld [vmem:[%s11] sm:$0x1]
        %v1553 = vlaneseq
        %v1554 = vshrl.u32 %v1553, 7
        %v1555 = vsub.s32 0, %v1554
        %v1556 = vrot.slane %v1551, %v1555
        %v1562 = vunpack.c.l.b16 %v1419
        %v1563 = vunpack.c.h.b16 %v1419
        %v1564 = vunpack.c.l.b16 %v1420
        %v1565 = vunpack.c.h.b16 %v1420
        %v1566 = vunpack.c.l.b16 %v1421
        %v1567 = vunpack.c.h.b16 %v1421
        %v1568 = vunpack.c.l.b16 %v1422
        %v1569 = vunpack.c.h.b16 %v1422
        %v1570 = vpack.c.b16 %v1562, %v1562
        %v1571 = vpack.c.b16 %v1563, %v1563
        %v1572 = vpack.c.b16 %v1564, %v1564
        %v1573 = vpack.c.b16 %v1565, %v1565
        %v1574 = vpack.c.b16 %v1566, %v1566
        %v1575 = vpack.c.b16 %v1567, %v1567
        %v1576 = vpack.c.b16 %v1568, %v1568
        %v1577 = vpack.c.b16 %v1569, %v1569
        %v1714 = vunpack.c.l.b16 %v1423
        %v1715 = vunpack.c.l.b16 %v1424
        %v1716 = vunpack.c.l.b16 %v1425
        %v1717 = vunpack.c.l.b16 %v1426
        %v1718 = vunpack.c.l.b16 %v1427
        %v1719 = vunpack.c.l.b16 %v1428
        %v1720 = vunpack.c.l.b16 %v1429
        %v1721 = vunpack.c.l.b16 %v1430
        %v1722 = vunpack.c.l.b16 %v1431
        %v1723 = vunpack.c.l.b16 %v1432
        %v1724 = vunpack.c.l.b16 %v1433
        %v1725 = vunpack.c.l.b16 %v1434
        %v1726 = vunpack.c.l.b16 %v1435
        %v1727 = vunpack.c.l.b16 %v1436
        %v1728 = vunpack.c.l.b16 %v1437
        %v1729 = vunpack.c.l.b16 %v1438
        %v1730 = vunpack.c.l.b16 %v1439
        %v1731 = vunpack.c.l.b16 %v1440
        %v1732 = vunpack.c.l.b16 %v1441
        %v1733 = vunpack.c.l.b16 %v1442
        %v1734 = vunpack.c.l.b16 %v1443
        %v1735 = vunpack.c.l.b16 %v1444
        %v1736 = vunpack.c.l.b16 %v1445
        %v1737 = vunpack.c.l.b16 %v1446
        %v1738 = vunpack.c.l.b16 %v1447
        %v1739 = vunpack.c.l.b16 %v1448
        %v1740 = vunpack.c.l.b16 %v1449
        %v1741 = vunpack.c.l.b16 %v1450
        %v1742 = vunpack.c.l.b16 %v1451
        %v1743 = vunpack.c.l.b16 %v1452
        %v1744 = vunpack.c.l.b16 %v1453
        %v1745 = vunpack.c.l.b16 %v1454
        %v1746 = vunpack.c.l.b16 %v1455
        %v1747 = vunpack.c.l.b16 %v1456
        %v1748 = vunpack.c.l.b16 %v1457
        %v1749 = vunpack.c.l.b16 %v1458
        %v1750 = vunpack.c.l.b16 %v1459
        %v1751 = vunpack.c.l.b16 %v1460
        %v1752 = vunpack.c.l.b16 %v1461
        %v1753 = vunpack.c.l.b16 %v1462
        %v1754 = vunpack.c.l.b16 %v1463
        %v1755 = vunpack.c.l.b16 %v1464
        %v1756 = vunpack.c.l.b16 %v1465
        %v1757 = vunpack.c.l.b16 %v1466
        %v1758 = vunpack.c.l.b16 %v1467
        %v1759 = vunpack.c.l.b16 %v1468
        %v1760 = vunpack.c.l.b16 %v1469
        %v1761 = vunpack.c.l.b16 %v1470
        %v1762 = vunpack.c.l.b16 %v1471
        %v1763 = vunpack.c.l.b16 %v1472
        %v1764 = vunpack.c.l.b16 %v1473
        %v1765 = vunpack.c.l.b16 %v1474
        %v1766 = vunpack.c.l.b16 %v1475
        %v1767 = vunpack.c.l.b16 %v1476
        %v1768 = vunpack.c.l.b16 %v1477
        %v1769 = vunpack.c.l.b16 %v1478
        %v1770 = vunpack.c.l.b16 %v1479
        %v1771 = vunpack.c.l.b16 %v1480
        %v1772 = vunpack.c.l.b16 %v1481
        %v1773 = vunpack.c.l.b16 %v1482
        %v1774 = vunpack.c.l.b16 %v1483
        %v1775 = vunpack.c.l.b16 %v1484
        %v1776 = vunpack.c.l.b16 %v1485
        %v1777 = vunpack.c.l.b16 %v1486
        %v1778 = vunpack.c.l.b16 %v1487
        %v1779 = vunpack.c.l.b16 %v1488
        %v1780 = vunpack.c.l.b16 %v1489
        %v1781 = vunpack.c.l.b16 %v1490
        %v1782 = vunpack.c.l.b16 %v1491
        %v1783 = vunpack.c.l.b16 %v1492
        %v1784 = vunpack.c.l.b16 %v1493
        %v1785 = vunpack.c.l.b16 %v1494
        %v1786 = vunpack.c.l.b16 %v1495
        %v1787 = vunpack.c.l.b16 %v1496
        %v1788 = vunpack.c.l.b16 %v1497
        %v1789 = vunpack.c.l.b16 %v1498
        %v1790 = vunpack.c.l.b16 %v1499
        %v1791 = vunpack.c.l.b16 %v1500
        %v1792 = vunpack.c.l.b16 %v1501
        %v1793 = vunpack.c.l.b16 %v1502
        %v1794 = vunpack.c.l.b16 %v1503
        %v1795 = vunpack.c.l.b16 %v1504
        %v1796 = vunpack.c.l.b16 %v1505
        %v1797 = vunpack.c.l.b16 %v1506
        %v1798 = vunpack.c.l.b16 %v1507
        %v1799 = vunpack.c.l.b16 %v1508
        %v1800 = vunpack.c.l.b16 %v1509
        %v1801 = vunpack.c.l.b16 %v1510
        %v1802 = vunpack.c.l.b16 %v1511
        %v1803 = vunpack.c.l.b16 %v1512
        %v1804 = vunpack.c.l.b16 %v1513
        %v1805 = vunpack.c.l.b16 %v1514
        %v1806 = vunpack.c.l.b16 %v1515
        %v1807 = vunpack.c.l.b16 %v1516
        %v1808 = vunpack.c.l.b16 %v1517
        %v1809 = vunpack.c.l.b16 %v1518
        %v1810 = vunpack.c.l.b16 %v1519
        %v1811 = vunpack.c.l.b16 %v1520
        %v1812 = vunpack.c.l.b16 %v1521
        %v1813 = vunpack.c.l.b16 %v1522
        %v1814 = vunpack.c.l.b16 %v1523
        %v1815 = vunpack.c.l.b16 %v1524
        %v1816 = vunpack.c.l.b16 %v1525
        %v1817 = vunpack.c.l.b16 %v1526
        %v1818 = vunpack.c.l.b16 %v1527
        %v1819 = vunpack.c.l.b16 %v1528
        %v1820 = vunpack.c.l.b16 %v1529
        %v1821 = vunpack.c.l.b16 %v1530
        %v1822 = vunpack.c.l.b16 %v1531
        %v1823 = vunpack.c.l.b16 %v1532
        %v1824 = vunpack.c.l.b16 %v1533
        %v1825 = vunpack.c.l.b16 %v1534
        %v1826 = vunpack.c.l.b16 %v1535
        %v1827 = vunpack.c.l.b16 %v1536
        %v1828 = vunpack.c.l.b16 %v1537
        %v1829 = vunpack.c.l.b16 %v1538
        %v1830 = vunpack.c.l.b16 %v1539
        %v1831 = vunpack.c.l.b16 %v1540
        %v1832 = vunpack.c.l.b16 %v1541
        %v1833 = vunpack.c.l.b16 %v1542
        %v1834 = vunpack.c.l.b16 %v1543
        %v1835 = vunpack.c.l.b16 %v1544
        %v1836 = vunpack.c.l.b16 %v1545
        %v1837 = vunpack.c.l.b16 %v1546
        %v1838 = vunpack.c.l.b16 %v1547
        %v1839 = vunpack.c.l.b16 %v1548
        %v1840 = vunpack.c.l.b16 %v1549
        %v1841 = vunpack.c.l.b16 %v1550
        %v1842 = vpack.c.b16 %v1715, %v1714
        %v1843 = vpack.c.b16 %v1717, %v1716
        %v1844 = vpack.c.b16 %v1719, %v1718
        %v1845 = vpack.c.b16 %v1721, %v1720
        %v1846 = vpack.c.b16 %v1723, %v1722
        %v1847 = vpack.c.b16 %v1725, %v1724
        %v1848 = vpack.c.b16 %v1727, %v1726
        %v1849 = vpack.c.b16 %v1729, %v1728
        %v1850 = vpack.c.b16 %v1731, %v1730
        %v1851 = vpack.c.b16 %v1733, %v1732
        %v1852 = vpack.c.b16 %v1735, %v1734
        %v1853 = vpack.c.b16 %v1737, %v1736
        %v1854 = vpack.c.b16 %v1739, %v1738
        %v1855 = vpack.c.b16 %v1741, %v1740
        %v1856 = vpack.c.b16 %v1743, %v1742
        %v1857 = vpack.c.b16 %v1745, %v1744
        %v1858 = vpack.c.b16 %v1747, %v1746
        %v1859 = vpack.c.b16 %v1749, %v1748
        %v1860 = vpack.c.b16 %v1751, %v1750
        %v1861 = vpack.c.b16 %v1753, %v1752
        %v1862 = vpack.c.b16 %v1755, %v1754
        %v1863 = vpack.c.b16 %v1757, %v1756
        %v1864 = vpack.c.b16 %v1759, %v1758
        %v1865 = vpack.c.b16 %v1761, %v1760
        %v1866 = vpack.c.b16 %v1763, %v1762
        %v1867 = vpack.c.b16 %v1765, %v1764
        %v1868 = vpack.c.b16 %v1767, %v1766
        %v1869 = vpack.c.b16 %v1769, %v1768
        %v1870 = vpack.c.b16 %v1771, %v1770
        %v1871 = vpack.c.b16 %v1773, %v1772
        %v1872 = vpack.c.b16 %v1775, %v1774
        %v1873 = vpack.c.b16 %v1777, %v1776
        %v1874 = vpack.c.b16 %v1779, %v1778
        %v1875 = vpack.c.b16 %v1781, %v1780
        %v1876 = vpack.c.b16 %v1783, %v1782
        %v1877 = vpack.c.b16 %v1785, %v1784
        %v1878 = vpack.c.b16 %v1787, %v1786
        %v1879 = vpack.c.b16 %v1789, %v1788
        %v1880 = vpack.c.b16 %v1791, %v1790
        %v1881 = vpack.c.b16 %v1793, %v1792
        %v1882 = vpack.c.b16 %v1795, %v1794
        %v1883 = vpack.c.b16 %v1797, %v1796
        %v1884 = vpack.c.b16 %v1799, %v1798
        %v1885 = vpack.c.b16 %v1801, %v1800
        %v1886 = vpack.c.b16 %v1803, %v1802
        %v1887 = vpack.c.b16 %v1805, %v1804
        %v1888 = vpack.c.b16 %v1807, %v1806
        %v1889 = vpack.c.b16 %v1809, %v1808
        %v1890 = vpack.c.b16 %v1811, %v1810
        %v1891 = vpack.c.b16 %v1813, %v1812
        %v1892 = vpack.c.b16 %v1815, %v1814
        %v1893 = vpack.c.b16 %v1817, %v1816
        %v1894 = vpack.c.b16 %v1819, %v1818
        %v1895 = vpack.c.b16 %v1821, %v1820
        %v1896 = vpack.c.b16 %v1823, %v1822
        %v1897 = vpack.c.b16 %v1825, %v1824
        %v1898 = vpack.c.b16 %v1827, %v1826
        %v1899 = vpack.c.b16 %v1829, %v1828
        %v1900 = vpack.c.b16 %v1831, %v1830
        %v1901 = vpack.c.b16 %v1833, %v1832
        %v1902 = vpack.c.b16 %v1835, %v1834
        %v1903 = vpack.c.b16 %v1837, %v1836
        %v1904 = vpack.c.b16 %v1839, %v1838
        %v1905 = vpack.c.b16 %v1841, %v1840
        %1970 = vmatprep.subr.bf16.mxu0 0
        %1971 = vmatpush1.bf16.msra.mxu0 %v1842
        %1972 = vmatprep.subr.bf16.mxu0 0
        %1973 = vmatpush1.bf16.msra.mxu0 %v1843
        %1974 = vmatprep.subr.bf16.mxu0 0
        %1975 = vmatpush1.bf16.msra.mxu0 %v1844
        %1976 = vmatprep.subr.bf16.mxu0 0
        %1977 = vmatpush1.bf16.msra.mxu0 %v1845
        %1978 = vmatprep.subr.bf16.mxu0 0
        %1979 = vmatpush1.bf16.msra.mxu0 %v1846
        %1980 = vmatprep.subr.bf16.mxu0 0
        %1981 = vmatpush1.bf16.msra.mxu0 %v1847
        %1982 = vmatprep.subr.bf16.mxu0 0
        %1983 = vmatpush1.bf16.msra.mxu0 %v1848
        %1984 = vmatprep.subr.bf16.mxu0 0
        %1985 = vmatpush1.bf16.msra.mxu0 %v1849
        %1986 = vmatprep.subr.bf16.mxu0 0
        %1987 = vmatpush1.bf16.msra.mxu0 %v1850
        %1988 = vmatprep.subr.bf16.mxu0 0
        %1989 = vmatpush1.bf16.msra.mxu0 %v1851
        %1990 = vmatprep.subr.bf16.mxu0 0
        %1991 = vmatpush1.bf16.msra.mxu0 %v1852
        %1992 = vmatprep.subr.bf16.mxu0 0
        %1993 = vmatpush1.bf16.msra.mxu0 %v1853
        %1994 = vmatprep.subr.bf16.mxu0 0
        %1995 = vmatpush1.bf16.msra.mxu0 %v1854
        %1996 = vmatprep.subr.bf16.mxu0 0
        %1997 = vmatpush1.bf16.msra.mxu0 %v1855
        %1998 = vmatprep.subr.bf16.mxu0 0
        %1999 = vmatpush1.bf16.msra.mxu0 %v1856
        %2000 = vmatprep.subr.bf16.mxu0 0
        %2001 = vmatpush1.bf16.msra.mxu0 %v1857
        %2002 = vmatprep.mubr.bf16.mxu0 %v1571
        %2003 = vmatmul.mubr.bf16.gmra.mrb[0].mxu0 %v1570
        %v2004 = vpop.f32.mrb[0].mxu0
        %v2005 = vadd.f32 %v1556, %v2004
        %v2006 = vpop.f32.mrb[0].mxu0
        %v2007 = vpop.f32.mrb[0].mxu0
        %v2008 = vpop.f32.mrb[0].mxu0
        %2009 = vdwg.mxu0
        %2010 = vmatprep.subr.bf16.mxu0 0
        %2011 = vmatpush1.bf16.msra.mxu0 %v1858
        %2012 = vmatprep.subr.bf16.mxu0 0
        %2013 = vmatpush1.bf16.msra.mxu0 %v1859
        %2014 = vmatprep.subr.bf16.mxu0 0
        %2015 = vmatpush1.bf16.msra.mxu0 %v1860
        %2016 = vmatprep.subr.bf16.mxu0 0
        %2017 = vmatpush1.bf16.msra.mxu0 %v1861
        %2018 = vmatprep.subr.bf16.mxu0 0
        %2019 = vmatpush1.bf16.msra.mxu0 %v1862
        %2020 = vmatprep.subr.bf16.mxu0 0
        %2021 = vmatpush1.bf16.msra.mxu0 %v1863
        %2022 = vmatprep.subr.bf16.mxu0 0
        %2023 = vmatpush1.bf16.msra.mxu0 %v1864
        %2024 = vmatprep.subr.bf16.mxu0 0
        %2025 = vmatpush1.bf16.msra.mxu0 %v1865
        %2026 = vmatprep.subr.bf16.mxu0 0
        %2027 = vmatpush1.bf16.msra.mxu0 %v1866
        %2028 = vmatprep.subr.bf16.mxu0 0
        %2029 = vmatpush1.bf16.msra.mxu0 %v1867
        %2030 = vmatprep.subr.bf16.mxu0 0
        %2031 = vmatpush1.bf16.msra.mxu0 %v1868
        %2032 = vmatprep.subr.bf16.mxu0 0
        %2033 = vmatpush1.bf16.msra.mxu0 %v1869
        %2034 = vmatprep.subr.bf16.mxu0 0
        %2035 = vmatpush1.bf16.msra.mxu0 %v1870
        %2036 = vmatprep.subr.bf16.mxu0 0
        %2037 = vmatpush1.bf16.msra.mxu0 %v1871
        %2038 = vmatprep.subr.bf16.mxu0 0
        %2039 = vmatpush1.bf16.msra.mxu0 %v1872
        %2040 = vmatprep.subr.bf16.mxu0 0
        %2041 = vmatpush1.bf16.msra.mxu0 %v1873
        %2042 = vmatprep.mubr.bf16.mxu0 %v1573
        %2043 = vmatmul.mubr.bf16.gmra.mrb[0].mxu0 %v1572
        %v2044 = vpop.f32.mrb[0].mxu0
        %v2045 = vadd.f32 %v2005, %v2044
        %v2046 = vpop.f32.mrb[0].mxu0
        %v2047 = vpop.f32.mrb[0].mxu0
        %v2048 = vpop.f32.mrb[0].mxu0
        %2049 = vdwg.mxu0
        %2050 = vmatprep.subr.bf16.mxu0 0
        %2051 = vmatpush1.bf16.msra.mxu0 %v1874
        %2052 = vmatprep.subr.bf16.mxu0 0
        %2053 = vmatpush1.bf16.msra.mxu0 %v1875
        %2054 = vmatprep.subr.bf16.mxu0 0
        %2055 = vmatpush1.bf16.msra.mxu0 %v1876
        %2056 = vmatprep.subr.bf16.mxu0 0
        %2057 = vmatpush1.bf16.msra.mxu0 %v1877
        %2058 = vmatprep.subr.bf16.mxu0 0
        %2059 = vmatpush1.bf16.msra.mxu0 %v1878
        %2060 = vmatprep.subr.bf16.mxu0 0
        %2061 = vmatpush1.bf16.msra.mxu0 %v1879
        %2062 = vmatprep.subr.bf16.mxu0 0
        %2063 = vmatpush1.bf16.msra.mxu0 %v1880
        %2064 = vmatprep.subr.bf16.mxu0 0
        %2065 = vmatpush1.bf16.msra.mxu0 %v1881
        %2066 = vmatprep.subr.bf16.mxu0 0
        %2067 = vmatpush1.bf16.msra.mxu0 %v1882
        %2068 = vmatprep.subr.bf16.mxu0 0
        %2069 = vmatpush1.bf16.msra.mxu0 %v1883
        %2070 = vmatprep.subr.bf16.mxu0 0
        %2071 = vmatpush1.bf16.msra.mxu0 %v1884
        %2072 = vmatprep.subr.bf16.mxu0 0
        %2073 = vmatpush1.bf16.msra.mxu0 %v1885
        %2074 = vmatprep.subr.bf16.mxu0 0
        %2075 = vmatpush1.bf16.msra.mxu0 %v1886
        %2076 = vmatprep.subr.bf16.mxu0 0
        %2077 = vmatpush1.bf16.msra.mxu0 %v1887
        %2078 = vmatprep.subr.bf16.mxu0 0
        %2079 = vmatpush1.bf16.msra.mxu0 %v1888
        %2080 = vmatprep.subr.bf16.mxu0 0
        %2081 = vmatpush1.bf16.msra.mxu0 %v1889
        %2082 = vmatprep.mubr.bf16.mxu0 %v1575
        %2083 = vmatmul.mubr.bf16.gmra.mrb[0].mxu0 %v1574
        %v2084 = vpop.f32.mrb[0].mxu0
        %v2085 = vadd.f32 %v2045, %v2084
        %v2086 = vpop.f32.mrb[0].mxu0
        %v2087 = vpop.f32.mrb[0].mxu0
        %v2088 = vpop.f32.mrb[0].mxu0
        %2089 = vdwg.mxu0
        %2090 = vmatprep.subr.bf16.mxu0 0
        %2091 = vmatpush1.bf16.msra.mxu0 %v1890
        %2092 = vmatprep.subr.bf16.mxu0 0
        %2093 = vmatpush1.bf16.msra.mxu0 %v1891
        %2094 = vmatprep.subr.bf16.mxu0 0
        %2095 = vmatpush1.bf16.msra.mxu0 %v1892
        %2096 = vmatprep.subr.bf16.mxu0 0
        %2097 = vmatpush1.bf16.msra.mxu0 %v1893
        %2098 = vmatprep.subr.bf16.mxu0 0
        %2099 = vmatpush1.bf16.msra.mxu0 %v1894
        %2100 = vmatprep.subr.bf16.mxu0 0
        %2101 = vmatpush1.bf16.msra.mxu0 %v1895
        %2102 = vmatprep.subr.bf16.mxu0 0
        %2103 = vmatpush1.bf16.msra.mxu0 %v1896
        %2104 = vmatprep.subr.bf16.mxu0 0
        %2105 = vmatpush1.bf16.msra.mxu0 %v1897
        %2106 = vmatprep.subr.bf16.mxu0 0
        %2107 = vmatpush1.bf16.msra.mxu0 %v1898
        %2108 = vmatprep.subr.bf16.mxu0 0
        %2109 = vmatpush1.bf16.msra.mxu0 %v1899
        %2110 = vmatprep.subr.bf16.mxu0 0
        %2111 = vmatpush1.bf16.msra.mxu0 %v1900
        %2112 = vmatprep.subr.bf16.mxu0 0
        %2113 = vmatpush1.bf16.msra.mxu0 %v1901
        %2114 = vmatprep.subr.bf16.mxu0 0
        %2115 = vmatpush1.bf16.msra.mxu0 %v1902
        %2116 = vmatprep.subr.bf16.mxu0 0
        %2117 = vmatpush1.bf16.msra.mxu0 %v1903
        %2118 = vmatprep.subr.bf16.mxu0 0
        %2119 = vmatpush1.bf16.msra.mxu0 %v1904
        %2120 = vmatprep.subr.bf16.mxu0 0
        %2121 = vmatpush1.bf16.msra.mxu0 %v1905
        %2122 = vmatprep.mubr.bf16.mxu0 %v1577
        %2123 = vmatmul.mubr.bf16.gmra.mrb[0].mxu0 %v1576
        %v2124 = vpop.f32.mrb[0].mxu0
        %v2125 = vadd.f32 %v2085, %v2124
        %v2126 = vpop.f32.mrb[0].mxu0
        %v2127 = vpop.f32.mrb[0].mxu0
        %v2128 = vpop.f32.mrb[0].mxu0
        %2129 = vdwg.mxu0
        %v2130 = vpack.c.bf16 %v863, %v863
        %v2131 = vld [vmem:[%s12] sm:$0xf]
        %v2132 = vld [vmem:[%s12 + $0x4] sm:$0xf]
        %v2133 = vld [vmem:[%s12 + $0x8] sm:$0xf]
        %v2134 = vld [vmem:[%s12 + $0xc] sm:$0xf]
        %v2135 = vld [vmem:[%s12 + $0x10] sm:$0xf]
        %v2136 = vld [vmem:[%s12 + $0x14] sm:$0xf]
        %v2137 = vld [vmem:[%s12 + $0x18] sm:$0xf]
        %v2138 = vld [vmem:[%s12 + $0x1c] sm:$0xf]
        %v2139 = vpack.c.bf16 %v946, %v946
        %v2140 = vld [vmem:[%s13] sm:$0xf]
        %v2141 = vld [vmem:[%s13 + $0x4] sm:$0xf]
        %v2142 = vld [vmem:[%s13 + $0x8] sm:$0xf]
        %v2143 = vld [vmem:[%s13 + $0xc] sm:$0xf]
        %v2144 = vld [vmem:[%s13 + $0x10] sm:$0xf]
        %v2145 = vld [vmem:[%s13 + $0x14] sm:$0xf]
        %v2146 = vld [vmem:[%s13 + $0x18] sm:$0xf]
        %v2147 = vld [vmem:[%s13 + $0x1c] sm:$0xf]
        %v2156 = vunpack.c.l.b16 %v2140
        %v2157 = vunpack.c.l.b16 %v2141
        %v2158 = vunpack.c.l.b16 %v2142
        %v2159 = vunpack.c.l.b16 %v2143
        %v2160 = vunpack.c.l.b16 %v2144
        %v2161 = vunpack.c.l.b16 %v2145
        %v2162 = vunpack.c.l.b16 %v2146
        %v2163 = vunpack.c.l.b16 %v2147
        %v2164 = vpack.c.b16 %v2157, %v2156
        %v2165 = vpack.c.b16 %v2159, %v2158
        %v2166 = vpack.c.b16 %v2161, %v2160
        %v2167 = vpack.c.b16 %v2163, %v2162
        %v2173 = vsel %vm784, %v2139, 0
        %2175 = vmatprep.subr.bf16.mxu0 0
        %2176 = vmatpush1.bf16.msra.mxu0 %v2164
        %2177 = vmatprep.subr.bf16.mxu0 0
        %2178 = vmatpush1.bf16.msra.mxu0 %v2165
        %2179 = vmatprep.subr.bf16.mxu0 0
        %2180 = vmatpush1.bf16.msra.mxu0 %v2166
        %2181 = vmatprep.subr.bf16.mxu0 0
        %2182 = vmatpush1.bf16.msra.mxu0 %v2167
        %2183 = vmatprep.subr.bf16.mxu0 0
        %2184 = vmatpush1.bf16.msra.mxu0 0
        %2185 = vmatprep.subr.bf16.mxu0 0
        %2186 = vmatpush1.bf16.msra.mxu0 0
        %2187 = vmatprep.subr.bf16.mxu0 0
        %2188 = vmatpush1.bf16.msra.mxu0 0
        %2189 = vmatprep.subr.bf16.mxu0 0
        %2190 = vmatpush1.bf16.msra.mxu0 0
        %2191 = vmatprep.subr.bf16.mxu0 0
        %2192 = vmatpush1.bf16.msra.mxu0 0
        %2193 = vmatprep.subr.bf16.mxu0 0
        %2194 = vmatpush1.bf16.msra.mxu0 0
        %2195 = vmatprep.subr.bf16.mxu0 0
        %2196 = vmatpush1.bf16.msra.mxu0 0
        %2197 = vmatprep.subr.bf16.mxu0 0
        %2198 = vmatpush1.bf16.msra.mxu0 0
        %2199 = vmatprep.subr.bf16.mxu0 0
        %2200 = vmatpush1.bf16.msra.mxu0 0
        %2201 = vmatprep.subr.bf16.mxu0 0
        %2202 = vmatpush1.bf16.msra.mxu0 0
        %2203 = vmatprep.subr.bf16.mxu0 0
        %2204 = vmatpush1.bf16.msra.mxu0 0
        %2205 = vmatprep.subr.bf16.mxu0 0
        %2206 = vmatpush1.bf16.msra.mxu0 0
        %2207 = vmatprep.mubr.bf16.mxu0 0
        %2208 = vmatmul.mubr.bf16.gmra.mrb[0].mxu0 %v2173
        %v2209 = vpop.f32.mrb[0].mxu0
        %v2210 = vadd.f32 0.0, %v2209
        %v2211 = vpop.f32.mrb[0].mxu0
        %v2212 = vpop.f32.mrb[0].mxu0
        %v2213 = vpop.f32.mrb[0].mxu0
        %2214 = vdwg.mxu0
        %v2223 = vunpack.c.l.b16 %v2131
        %v2224 = vunpack.c.l.b16 %v2132
        %v2225 = vunpack.c.l.b16 %v2133
        %v2226 = vunpack.c.l.b16 %v2134
        %v2227 = vunpack.c.l.b16 %v2135
        %v2228 = vunpack.c.l.b16 %v2136
        %v2229 = vunpack.c.l.b16 %v2137
        %v2230 = vunpack.c.l.b16 %v2138
        %v2231 = vpack.c.b16 %v2224, %v2223
        %v2232 = vpack.c.b16 %v2226, %v2225
        %v2233 = vpack.c.b16 %v2228, %v2227
        %v2234 = vpack.c.b16 %v2230, %v2229
        %v2240 = vsel %vm784, %v2130, 0
        %2242 = vmatprep.subr.bf16.mxu0 0
        %2243 = vmatpush1.bf16.msra.mxu0 %v2231
        %2244 = vmatprep.subr.bf16.mxu0 0
        %2245 = vmatpush1.bf16.msra.mxu0 %v2232
        %2246 = vmatprep.subr.bf16.mxu0 0
        %2247 = vmatpush1.bf16.msra.mxu0 %v2233
        %2248 = vmatprep.subr.bf16.mxu0 0
        %2249 = vmatpush1.bf16.msra.mxu0 %v2234
        %2250 = vmatprep.subr.bf16.mxu0 0
        %2251 = vmatpush1.bf16.msra.mxu0 0
        %2252 = vmatprep.subr.bf16.mxu0 0
        %2253 = vmatpush1.bf16.msra.mxu0 0
        %2254 = vmatprep.subr.bf16.mxu0 0
        %2255 = vmatpush1.bf16.msra.mxu0 0
        %2256 = vmatprep.subr.bf16.mxu0 0
        %2257 = vmatpush1.bf16.msra.mxu0 0
        %2258 = vmatprep.subr.bf16.mxu0 0
        %2259 = vmatpush1.bf16.msra.mxu0 0
        %2260 = vmatprep.subr.bf16.mxu0 0
        %2261 = vmatpush1.bf16.msra.mxu0 0
        %2262 = vmatprep.subr.bf16.mxu0 0
        %2263 = vmatpush1.bf16.msra.mxu0 0
        %2264 = vmatprep.subr.bf16.mxu0 0
        %2265 = vmatpush1.bf16.msra.mxu0 0
        %2266 = vmatprep.subr.bf16.mxu0 0
        %2267 = vmatpush1.bf16.msra.mxu0 0
        %2268 = vmatprep.subr.bf16.mxu0 0
        %2269 = vmatpush1.bf16.msra.mxu0 0
        %2270 = vmatprep.subr.bf16.mxu0 0
        %2271 = vmatpush1.bf16.msra.mxu0 0
        %2272 = vmatprep.subr.bf16.mxu0 0
        %2273 = vmatpush1.bf16.msra.mxu0 0
        %2274 = vmatprep.mubr.bf16.mxu0 0
        %2275 = vmatmul.mubr.bf16.gmra.mrb[0].mxu0 %v2240
        %v2276 = vpop.f32.mrb[0].mxu0
        %v2277 = vadd.f32 %v2210, %v2276
        %v2278 = vpop.f32.mrb[0].mxu0
        %v2279 = vpop.f32.mrb[0].mxu0
        %v2280 = vpop.f32.mrb[0].mxu0
        %2281 = vdwg.mxu0
        %v2282 = vpack.c.bf16 %v1414, %v1414
        %v2283 = vld [vmem:[%s14] sm:$0xf]
        %v2284 = vld [vmem:[%s14 + $0x4] sm:$0xf]
        %v2285 = vld [vmem:[%s14 + $0x8] sm:$0xf]
        %v2286 = vld [vmem:[%s14 + $0xc] sm:$0xf]
        %v2287 = vld [vmem:[%s14 + $0x10] sm:$0xf]
        %v2288 = vld [vmem:[%s14 + $0x14] sm:$0xf]
        %v2289 = vld [vmem:[%s14 + $0x18] sm:$0xf]
        %v2290 = vld [vmem:[%s14 + $0x1c] sm:$0xf]
        %v2299 = vunpack.c.l.b16 %v2283
        %v2300 = vunpack.c.l.b16 %v2284
        %v2301 = vunpack.c.l.b16 %v2285
        %v2302 = vunpack.c.l.b16 %v2286
        %v2303 = vunpack.c.l.b16 %v2287
        %v2304 = vunpack.c.l.b16 %v2288
        %v2305 = vunpack.c.l.b16 %v2289
        %v2306 = vunpack.c.l.b16 %v2290
        %v2307 = vpack.c.b16 %v2300, %v2299
        %v2308 = vpack.c.b16 %v2302, %v2301
        %v2309 = vpack.c.b16 %v2304, %v2303
        %v2310 = vpack.c.b16 %v2306, %v2305
        %v2316 = vsel %vm784, %v2282, 0
        %2318 = vmatprep.subr.bf16.mxu0 0
        %2319 = vmatpush1.bf16.msra.mxu0 %v2307
        %2320 = vmatprep.subr.bf16.mxu0 0
        %2321 = vmatpush1.bf16.msra.mxu0 %v2308
        %2322 = vmatprep.subr.bf16.mxu0 0
        %2323 = vmatpush1.bf16.msra.mxu0 %v2309
        %2324 = vmatprep.subr.bf16.mxu0 0
        %2325 = vmatpush1.bf16.msra.mxu0 %v2310
        %2326 = vmatprep.subr.bf16.mxu0 0
        %2327 = vmatpush1.bf16.msra.mxu0 0
        %2328 = vmatprep.subr.bf16.mxu0 0
        %2329 = vmatpush1.bf16.msra.mxu0 0
        %2330 = vmatprep.subr.bf16.mxu0 0
        %2331 = vmatpush1.bf16.msra.mxu0 0
        %2332 = vmatprep.subr.bf16.mxu0 0
        %2333 = vmatpush1.bf16.msra.mxu0 0
        %2334 = vmatprep.subr.bf16.mxu0 0
        %2335 = vmatpush1.bf16.msra.mxu0 0
        %2336 = vmatprep.subr.bf16.mxu0 0
        %2337 = vmatpush1.bf16.msra.mxu0 0
        %2338 = vmatprep.subr.bf16.mxu0 0
        %2339 = vmatpush1.bf16.msra.mxu0 0
        %2340 = vmatprep.subr.bf16.mxu0 0
        %2341 = vmatpush1.bf16.msra.mxu0 0
        %2342 = vmatprep.subr.bf16.mxu0 0
        %2343 = vmatpush1.bf16.msra.mxu0 0
        %2344 = vmatprep.subr.bf16.mxu0 0
        %2345 = vmatpush1.bf16.msra.mxu0 0
        %2346 = vmatprep.subr.bf16.mxu0 0
        %2347 = vmatpush1.bf16.msra.mxu0 0
        %2348 = vmatprep.subr.bf16.mxu0 0
        %2349 = vmatpush1.bf16.msra.mxu0 0
        %2350 = vmatprep.mubr.bf16.mxu0 0
        %2351 = vmatmul.mubr.bf16.gmra.mrb[0].mxu0 %v2316
        %v2352 = vpop.f32.mrb[0].mxu0
        %v2353 = vadd.f32 0.0, %v2352
        %v2354 = vpop.f32.mrb[0].mxu0
        %v2355 = vpop.f32.mrb[0].mxu0
        %v2356 = vpop.f32.mrb[0].mxu0
        %2357 = vdwg.mxu0
        %v2358 = vadd.f32 %v2277, %v2353
        %v2359 = vpack.c.bf16 %v2125, %v2125
        %v2360 = vld [vmem:[%s15] sm:$0xf]
        %v2361 = vld [vmem:[%s15 + $0x4] sm:$0xf]
        %v2362 = vld [vmem:[%s15 + $0x8] sm:$0xf]
        %v2363 = vld [vmem:[%s15 + $0xc] sm:$0xf]
        %v2364 = vld [vmem:[%s15 + $0x10] sm:$0xf]
        %v2365 = vld [vmem:[%s15 + $0x14] sm:$0xf]
        %v2366 = vld [vmem:[%s15 + $0x18] sm:$0xf]
        %v2367 = vld [vmem:[%s15 + $0x1c] sm:$0xf]
        %v2376 = vunpack.c.l.b16 %v2360
        %v2377 = vunpack.c.l.b16 %v2361
        %v2378 = vunpack.c.l.b16 %v2362
        %v2379 = vunpack.c.l.b16 %v2363
        %v2380 = vunpack.c.l.b16 %v2364
        %v2381 = vunpack.c.l.b16 %v2365
        %v2382 = vunpack.c.l.b16 %v2366
        %v2383 = vunpack.c.l.b16 %v2367
        %v2384 = vpack.c.b16 %v2377, %v2376
        %v2385 = vpack.c.b16 %v2379, %v2378
        %v2386 = vpack.c.b16 %v2381, %v2380
        %v2387 = vpack.c.b16 %v2383, %v2382
        %v2393 = vsel %vm784, %v2359, 0
        %2395 = vmatprep.subr.bf16.mxu0 0
        %2396 = vmatpush1.bf16.msra.mxu0 %v2384
        %2397 = vmatprep.subr.bf16.mxu0 0
        %2398 = vmatpush1.bf16.msra.mxu0 %v2385
        %2399 = vmatprep.subr.bf16.mxu0 0
        %2400 = vmatpush1.bf16.msra.mxu0 %v2386
        %2401 = vmatprep.subr.bf16.mxu0 0
        %2402 = vmatpush1.bf16.msra.mxu0 %v2387
        %2403 = vmatprep.subr.bf16.mxu0 0
        %2404 = vmatpush1.bf16.msra.mxu0 0
        %2405 = vmatprep.subr.bf16.mxu0 0
        %2406 = vmatpush1.bf16.msra.mxu0 0
        %2407 = vmatprep.subr.bf16.mxu0 0
        %2408 = vmatpush1.bf16.msra.mxu0 0
        %2409 = vmatprep.subr.bf16.mxu0 0
        %2410 = vmatpush1.bf16.msra.mxu0 0
        %2411 = vmatprep.subr.bf16.mxu0 0
        %2412 = vmatpush1.bf16.msra.mxu0 0
        %2413 = vmatprep.subr.bf16.mxu0 0
        %2414 = vmatpush1.bf16.msra.mxu0 0
        %2415 = vmatprep.subr.bf16.mxu0 0
        %2416 = vmatpush1.bf16.msra.mxu0 0
        %2417 = vmatprep.subr.bf16.mxu0 0
        %2418 = vmatpush1.bf16.msra.mxu0 0
        %2419 = vmatprep.subr.bf16.mxu0 0
        %2420 = vmatpush1.bf16.msra.mxu0 0
        %2421 = vmatprep.subr.bf16.mxu0 0
        %2422 = vmatpush1.bf16.msra.mxu0 0
        %2423 = vmatprep.subr.bf16.mxu0 0
        %2424 = vmatpush1.bf16.msra.mxu0 0
        %2425 = vmatprep.subr.bf16.mxu0 0
        %2426 = vmatpush1.bf16.msra.mxu0 0
        %2427 = vmatprep.mubr.bf16.mxu0 0
        %2428 = vmatmul.mubr.bf16.gmra.mrb[0].mxu0 %v2393
        %v2429 = vpop.f32.mrb[0].mxu0
        %v2430 = vadd.f32 0.0, %v2429
        %v2431 = vpop.f32.mrb[0].mxu0
        %v2432 = vpop.f32.mrb[0].mxu0
        %v2433 = vpop.f32.mrb[0].mxu0
        %2434 = vdwg.mxu0
        %v2435 = vadd.f32 %v2358, %v2430
        %v2436 = vld [vmem:[%s16] sm:$0x1]
        %v2438 = vlaneseq
        %v2439 = vshrl.u32 %v2438, 7
        %v2440 = vsub.s32 0, %v2439
        %v2441 = vrot.slane %v2436, %v2440
        %v2443 = vadd.f32 %v2435, %v2441
        %v2444 = vmax.f32 %v2443, 0.0
        %v2445 = vmul.f32 %v2444, %v2444
        %2446 = vadd.xlane.f32.xlu0 %v2445
        %v2447 = vpop.xlane.xlu0 %2446
        %v2448 = vmax.f32 %v2447, 1e-24
        %v2449 = vrsqrt.pop %v2448
        %v2450 = vmul.f32 %v2444, %v2449
        %2451 = vst [vmem:[%s584] sm:$0xff] %v2450
        %s2452 = sand.u32 %s416, 1
        %s2453 = scalar_lea.sflag [#allocation3], %s2452
        %s2454 = sand.u32 %s416, 1
        %s2455 = smul.addr %s2454, 8
        %s2456 = scalar_lea.vmem [#allocation2], %s2455
        // Predicated region
        $region89: #{combined_trinet_forward.1} parent=87 // pred_check
          %p2457 = pneg %p426
        $region90: #{combined_trinet_forward.1} parent=87 // pred_check_branch
          %2459 = sbr.rel (%p2457) target = $region92
        $region91: #{combined_trinet_forward.1} parent=87 // pred_region
          %s2461 = ssub.s32 128, 128
          %2462 = vsyncadd %s2453, %s2461
          %s2463 = smul.addr %s31, 128
          %s2464 = scalar_lea.hbm %s17, %s2463
          %s2466 = sshll.u32 %s2456, 4
          %s2467 = int_to_ptr.vmem [resolvable:$true] %s2466
          %2469 = dma.vmem_to_hbm [thread:$0]  %s2467, 128, %s2464, %s2453
        $region92: #{combined_trinet_forward.1} parent=87 // pred_fallthru
          _
      $region88: #{combined_trinet_forward.1} parent=5 // pred_fallthru
        _
      %p2470 = scmp.le.s32.totalorder 2, %s26
      // Predicated region
      $region93: #{combined_trinet_forward.1} parent=5 // pred_check
        %p2471 = pneg %p2470
      $region94: #{combined_trinet_forward.1} parent=5 // pred_check_branch
        %2473 = sbr.rel (%p2471) target = $region96
      $region95: #{combined_trinet_forward.1} parent=5 // pred_region
        %s2474 = ssub.s32 %s26, 2
        // Predicated region
        $region97: #{combined_trinet_forward.1} parent=95 // pred_check
          %p2475 = pneg %p432
        $region98: #{combined_trinet_forward.1} parent=95 // pred_check_branch
          %2477 = sbr.rel (%p2475) target = $region100
        $region99: #{combined_trinet_forward.1} parent=95 // pred_region
          %s2478 = sand.u32 %s417, 1
          %s2479 = scalar_lea.sflag [#allocation3], %s2478
          %s2480 = sand.u32 %s417, 1
          %s2481 = smul.addr %s2480, 8
          %s2482 = scalar_lea.vmem [#allocation2], %s2481
          %2483 = dma.done %s2479, 128
        $region100: #{combined_trinet_forward.1} parent=95 // pred_fallthru
          _
      $region96: #{combined_trinet_forward.1} parent=5 // pred_fallthru
        _
    $region6: #{combined_trinet_forward.1} parent=1 // loop_footer
      %s30 = sadd.s32 1, %s26
    $region7: #{combined_trinet_forward.1} parent=1 // loop_footer_branch
      %25 = sbr.rel target = $region3
    $region8: #{combined_trinet_forward.1} parent=1 // loop_exit
      _
    %2484 = vsyncpa [#allocation3], 1
    %s2485 = scalar_lea.sflag [#allocation3], 1
    %2486 = vsyncpa %s2485, 1

</llo_original>
